<compile_context>
chip_gen: v5e
topology: v5e:2x2
jax: 0.10.0
libtpu: 0.0.40
codegen_flags: <defaults>
</compile_context>

<pallas_src>
import functools

import jax
import jax.numpy as jnp
from jax import lax
from jax.experimental import pallas as pl
from jax.experimental.pallas import tpu as pltpu

_KP = 128  # lane-padded width of one padded input row ((W+4)*C <= 128 assumed)


# ----------------------------------------------------------------------------
# Single fused kernel: multi-scale conv + SE + fusion conv + BN(+stats) + ReLU
# ----------------------------------------------------------------------------
def _msffe_kernel(B, H, W, C, se_vpu, eps,
                  x_ref,     # (B, H/2, 6*128)   bf16  row-pair conv context
                  m_ref,     # (6*128, 2*W*3C)   bf16  banded multi-scale conv
                  bcat_ref,  # (1, 2*W*3C)       f32   [b1|b3|b5] tiled
                  wse1_ref,  # SE fc1 (layout depends on se_vpu, see packer)
                  wse2_ref,  # SE fc2
                  wf_ref,    # (2*W*3C, 2*W*C)   bf16  block-diag fusion 1x1 conv
                  bf_ref,    # (1, 2*W*C)        f32
                  red_ref,   # (2*W*C, C)        f32   lane -> channel reduce
                  redT_ref,  # (C, 2*W*C)        f32   channel -> lane broadcast
                  gb_ref,    # (2, C)            f32   [gamma; beta]
                  o_ref):    # (B, H/2, 2*W*C)   f32
    inv_hw = 1.0 / float(H * W)
    inv_n = 1.0 / float(B * H * W)

    ff = []
    for b in range(B):                       # B tiny & static -> unrolled
        # 1x1 + 3x3 + 5x5 convs + channel concat: ONE banded MXU matmul.
        fus = jnp.dot(x_ref[b], m_ref[...],
                      preferred_element_type=jnp.float32) + bcat_ref[...]
        # Squeeze-excitation (per sample); global avg-pool folded into fc1.
        pooled = jnp.sum(fus, axis=0, keepdims=True)            # (1, 2*W*3C)
        if se_vpu:
            # r == 1: keep SE off the MXU (lane reduce + scalar broadcast).
            h = jnp.sum(pooled * wse1_ref[...], axis=-1, keepdims=True) * inv_hw
            h = h * jax.nn.sigmoid(h)                           # Swish (EUP)
            s = jax.nn.sigmoid(h * wse2_ref[...])               # (1, 2*W*3C)
        else:
            h = jnp.dot(pooled, wse1_ref[...],
                        preferred_element_type=jnp.float32) * inv_hw
            h = h * jax.nn.sigmoid(h)
            s = jax.nn.sigmoid(jnp.dot(h, wse2_ref[...],
                                       preferred_element_type=jnp.float32))
        fus = fus * s                                           # f32 scaling
        # Fusion 1x1 conv: block-diagonal matmul, output natively lane-dense.
        ff.append(jnp.dot(fus.astype(wf_ref.dtype), wf_ref[...],
                          preferred_element_type=jnp.float32) + bf_ref[...])

    # BatchNorm2d batch statistics (training-mode, biased variance), computed
    # mean-subtracted to avoid E[x^2]-E[x]^2 cancellation.
    # TODO(synk): running_mean/running_var (momentum) buffer updates of
    # nn.BatchNorm2d are not modeled (they do not affect the forward output).
    ssum = jnp.zeros((1, C), jnp.float32)
    for b in range(B):
        ssum = ssum + jnp.dot(jnp.sum(ff[b], axis=0, keepdims=True),
                              red_ref[...], preferred_element_type=jnp.float32)
    mean_c = ssum * inv_n                                        # (1, C)
    mean_l = jnp.dot(mean_c, redT_ref[...],
                     preferred_element_type=jnp.float32)         # (1, 2*W*C)
    ssq = jnp.zeros((1, C), jnp.float32)
    for b in range(B):
        d = ff[b] - mean_l
        ssq = ssq + jnp.dot(jnp.sum(d * d, axis=0, keepdims=True),
                            red_ref[...], preferred_element_type=jnp.float32)
    var_c = ssq * inv_n                                          # (1, C)

    gb = gb_ref[...]                                             # (2, C)
    scale_c = gb[0:1, :] * lax.rsqrt(var_c + eps)                # gamma / std
    shift_c = gb[1:2, :] - mean_c * scale_c                      # beta - mean*scale
    scale_l = jnp.dot(scale_c, redT_ref[...], preferred_element_type=jnp.float32)
    shift_l = jnp.dot(shift_c, redT_ref[...], preferred_element_type=jnp.float32)

    # Fused BN + ReLU, lane-dense stores.
    for b in range(B):
        o_ref[b] = jnp.maximum(ff[b] * scale_l + shift_l, 0.0)


# ----------------------------------------------------------------------------
# One-time weight packing (call once per parameter set, reuse across forwards)
# ----------------------------------------------------------------------------
def pack_msffe_params(params, H, W):
    C = params["w1"].shape[0]
    C3 = 3 * C
    r = params["wse1"].shape[1]
    assert (W + 4) * C <= _KP, "generalize lane packing for larger (W+4)*C"
    assert H % 2 == 0, "row-pair packing assumes even H"

    # Per-tap packed conv weights (dy, dx, Cin, 3*Cout); output channel order
    # matches torch.cat([conv1, conv3, conv5], dim=1).
    wpack = jnp.zeros((5, 5, C, C3), jnp.float32)
    wpack = wpack.at[:, :, :, 2 * C:].set(params["w5"])
    wpack = wpack.at[1:4, 1:4, :, C:2 * C].set(params["w3"])
    wpack = wpack.at[2, 2, :, :C].set(params["w1"])
    shift = (jnp.arange(W + 4)[None, None, :]
             == (jnp.arange(W)[None, :, None] + jnp.arange(5)[:, None, None])
             ).astype(jnp.float32)                               # (5, W, W+4)
    # m_dy[dy, (w+dx)*C + ci, w*3C + co] = wpack[dy, dx, ci, co]
    m_dy = jnp.einsum("xwp,yxio->ypiwo", shift, wpack).reshape(
        5, (W + 4) * C, W * C3)

    # Row-pair banded matrix: lane-group k of the activation holds padded row
    # 2i+k (k=0..5); output row-group g (image row 2i+g) reads groups g..g+4.
    m2 = jnp.zeros((6 * _KP, 2 * W * C3), jnp.float32)
    for g in range(2):
        for dy in range(5):
            m2 = m2.at[(g + dy) * _KP:(g + dy) * _KP + (W + 4) * C,
                       g * W * C3:(g + 1) * W * C3].set(m_dy[dy])

    bcat = jnp.concatenate([params["b1"], params["b3"], params["b5"]], axis=1)
    bcat2 = jnp.tile(bcat, (1, 2 * W))                           # (1, 2*W*3C)

    if r == 1:
        # SE on the VPU: fc1 as lane reduce, fc2 as scalar broadcast.
        wse1 = jnp.tile(params["wse1"].T, (1, 2 * W))            # (1, 2*W*3C)
        wse2 = jnp.tile(params["wse2"], (1, 2 * W))              # (1, 2*W*3C)
    else:
        wse1 = jnp.tile(params["wse1"], (2 * W, 1))              # (2*W*3C, r)
        wse2 = jnp.tile(params["wse2"], (1, 2 * W))              # (r, 2*W*3C)

    wf2 = jnp.einsum("wv,ko->wkvo", jnp.eye(2 * W, dtype=jnp.float32),
                     params["wf"]).reshape(2 * W * C3, 2 * W * C)  # block-diag
    bf2 = jnp.tile(params["bf"], (1, 2 * W))                     # (1, 2*W*C)
    red = jnp.tile(jnp.eye(C, dtype=jnp.float32), (2 * W, 1))    # (2*W*C, C)
    redT = jnp.tile(jnp.eye(C, dtype=jnp.float32), (1, 2 * W))   # (C, 2*W*C)
    gb = jnp.concatenate([params["gamma"], params["beta"]], axis=0)  # (2, C)

    return dict(m2=m2.astype(jnp.bfloat16), bcat2=bcat2, wse1=wse1, wse2=wse2,
                wf2=wf2.astype(jnp.bfloat16), bf2=bf2, red=red, redT=redT, gb=gb)


# ----------------------------------------------------------------------------
# Jitted apply (packing is NOT redone here)
# ----------------------------------------------------------------------------
@functools.partial(jax.jit, static_argnames=("eps",))
def msffe_apply(x_nchw, packed, eps=1e-5):
    B, C, H, W = x_nchw.shape
    C3 = 3 * C
    rows = H // 2
    lanes = 2 * W * C

    # NHWC, zero-pad 2 per spatial side, collapse (W, C) into lanes, lane-pad.
    x = jnp.transpose(x_nchw, (0, 2, 3, 1)).astype(jnp.float32)
    xp = jnp.pad(x, ((0, 0), (2, 2), (2, 2), (0, 0))).reshape(B, H + 4, (W + 4) * C)
    xp = jnp.pad(xp, ((0, 0), (0, 0), (0, _KP - (W + 4) * C)))   # (B, H+4, 128)
    # Row-pair context pack: lane-group k holds padded row 2i+k (k = 0..5).
    xcat = jnp.concatenate([xp[:, k:k + H:2, :] for k in range(6)],
                           axis=-1).astype(jnp.bfloat16)         # (B, H/2, 768)

    se_vpu = packed["wse1"].shape[0] == 1
    kernel = functools.partial(_msffe_kernel, B, H, W, C, se_vpu, eps)

    def full(shape):
        return pl.BlockSpec(shape, lambda i, _n=len(shape): (0,) * _n)

    out = pl.pallas_call(
        kernel,
        grid=(1,),                                   # single fused invocation
        in_specs=[
            full((B, rows, 6 * _KP)),
            full((6 * _KP, 2 * W * C3)),
            full((1, 2 * W * C3)),
            full(packed["wse1"].shape),
            full(packed["wse2"].shape),
            full((2 * W * C3, lanes)),
            full((1, lanes)),
            full((lanes, C)),
            full((C, lanes)),
            full((2, C)),
        ],
        out_specs=full((B, rows, lanes)),
        out_shape=jax.ShapeDtypeStruct((B, rows, lanes), jnp.float32),
        compiler_params=pltpu.CompilerParams(
            dimension_semantics=("arbitrary",)),
    )(xcat, packed["m2"], packed["bcat2"], packed["wse1"], packed["wse2"],
      packed["wf2"], packed["bf2"], packed["red"], packed["redT"], packed["gb"])

    # (B, H/2, [g, w, c]) -> (B, C, H, W)
    out = out.reshape(B, rows, 2, W, C)
    return jnp.transpose(out, (0, 4, 1, 2, 3)).reshape(B, C, H, W)


def msffe_forward(x_nchw, params, eps=1e-5):
    """Convenience wrapper. For repeated forwards, cache pack_msffe_params()
    and call msffe_apply() directly (packing is one-time layout plumbing)."""
    _, _, H, W = x_nchw.shape
    return msffe_apply(x_nchw, pack_msffe_params(params, H, W), eps=eps)


# ----------------------------------------------------------------------------
# Parameters (internal layout: (Cin, Cout) / (kh, kw, Cin, Cout))
# ----------------------------------------------------------------------------
def init_params(key, C):
    C3 = 3 * C
    r = max(1, C3 // 16)            # SE reduction (matches max(1, channel // 16))
    ks = jax.random.split(key, 9)
    sc = 0.1
    return dict(
        w1=jax.random.normal(ks[0], (C, C), jnp.float32) * sc,
        b1=jax.random.normal(ks[1], (1, C), jnp.float32) * sc,
        w3=jax.random.normal(ks[2], (3, 3, C, C), jnp.float32) * sc,
        b3=jax.random.normal(ks[3], (1, C), jnp.float32) * sc,
        w5=jax.random.normal(ks[4], (5, 5, C, C), jnp.float32) * sc,
        b5=jax.random.normal(ks[5], (1, C), jnp.float32) * sc,
        wse1=jax.random.normal(ks[6], (C3, r), jnp.float32) * sc,
        wse2=jax.random.normal(ks[7], (r, C3), jnp.float32) * sc,
        wf=jax.random.normal(ks[8], (C3, C), jnp.float32) * sc,
        bf=jnp.zeros((1, C), jnp.float32),
        gamma=jnp.ones((1, C), jnp.float32),   # BN default init
        beta=jnp.zeros((1, C), jnp.float32),
    )


# ----------------------------------------------------------------------------
# Pure-JAX f32 reference (independent code path) for a correctness sanity check
# ----------------------------------------------------------------------------
def _reference_forward(x_nchw, params, eps=1e-5):
    B, C, H, W = x_nchw.shape
    x = jnp.transpose(x_nchw, (0, 2, 3, 1)).astype(jnp.float32)   # NHWC

    def conv(xi, w_hwio, b, pad):
        y = lax.conv_general_dilated(
            xi, w_hwio, (1, 1), [(pad, pad), (pad, pad)],
            dimension_numbers=("NHWC", "HWIO", "NHWC"),
            precision=lax.Precision.HIGHEST)
        return y + b.reshape(1, 1, 1, -1)

    c1 = conv(x, params["w1"].reshape(1, 1, C, C), params["b1"], 0)
    c3 = conv(x, params["w3"], params["b3"], 1)
    c5 = conv(x, params["w5"], params["b5"], 2)
    fus = jnp.concatenate([c1, c3, c5], axis=-1)                  # (B,H,W,3C)
    y = jnp.mean(fus, axis=(1, 2))                                # (B,3C)
    h = jnp.dot(y, params["wse1"], precision=lax.Precision.HIGHEST)
    h = h * jax.nn.sigmoid(h)
    s = jax.nn.sigmoid(jnp.dot(h, params["wse2"],
                               precision=lax.Precision.HIGHEST))  # (B,3C)
    fus = fus * s[:, None, None, :]
    ff = jnp.einsum("bhwk,kc->bhwc", fus, params["wf"],
                    precision=lax.Precision.HIGHEST) + params["bf"].reshape(1, 1, 1, C)
    mean = jnp.mean(ff, axis=(0, 1, 2))
    var = jnp.mean((ff - mean) ** 2, axis=(0, 1, 2))
    out = (ff - mean) * lax.rsqrt(var + eps) * params["gamma"][0] + params["beta"][0]
    out = jnp.maximum(out, 0.0)
    return jnp.transpose(out, (0, 3, 1, 2))


if __name__ == "__main__":
    B, C, H, W = 2, 4, 16, 16
    key = jax.random.PRNGKey(0)
    kx, kp = jax.random.split(key)
    x = jax.random.normal(kx, (B, C, H, W), jnp.float32)
    params = init_params(kp, C)

    packed = pack_msffe_params(params, H, W)     # one-time weight packing
    out = msffe_apply(x, packed)
    jax.block_until_ready(out)
    assert out.shape == (B, C, H, W)

    ref = _reference_forward(x, params)
    err = float(jnp.max(jnp.abs(out - ref)))
    # bf16 MXU inputs -> a few e-2 max abs error vs the all-f32 reference.
    assert err < 5e-2, f"max abs err vs reference: {err}"
    print("KERNEL_OK")
</pallas_src>

<mosaic_0001>
module attributes {stable_mosaic.version = 11 : i64} {
  func.func @_msffe_kernel(%arg0: i32, %arg1: memref<2x8x768xbf16, #tpu.memory_space<vmem>>, %arg2: memref<768x384xbf16, #tpu.memory_space<vmem>>, %arg3: memref<1x384xf32, #tpu.memory_space<vmem>>, %arg4: memref<1x384xf32, #tpu.memory_space<vmem>>, %arg5: memref<1x384xf32, #tpu.memory_space<vmem>>, %arg6: memref<384x128xbf16, #tpu.memory_space<vmem>>, %arg7: memref<1x128xf32, #tpu.memory_space<vmem>>, %arg8: memref<128x4xf32, #tpu.memory_space<vmem>>, %arg9: memref<4x128xf32, #tpu.memory_space<vmem>>, %arg10: memref<2x4xf32, #tpu.memory_space<vmem>>, %arg11: memref<2x8x128xf32, #tpu.memory_space<vmem>>) attributes {dimension_semantics = [#tpu.dimension_semantics<arbitrary>], iteration_bounds = array<i64: 1>, scalar_prefetch = 0 : i64, scratch_operands = 0 : i64, tpu.core_type = #tpu.core_type<tc>, window_params = [{pipeline_mode = #tpu.pipeline_mode<synchronous>, transform_indices = @transform_0, window_bounds = array<i64: 2, 8, 768>}, {pipeline_mode = #tpu.pipeline_mode<synchronous>, transform_indices = @transform_1, window_bounds = array<i64: 768, 384>}, {pipeline_mode = #tpu.pipeline_mode<synchronous>, transform_indices = @transform_2, window_bounds = array<i64: 1, 384>}, {pipeline_mode = #tpu.pipeline_mode<synchronous>, transform_indices = @transform_3, window_bounds = array<i64: 1, 384>}, {pipeline_mode = #tpu.pipeline_mode<synchronous>, transform_indices = @transform_4, window_bounds = array<i64: 1, 384>}, {pipeline_mode = #tpu.pipeline_mode<synchronous>, transform_indices = @transform_5, window_bounds = array<i64: 384, 128>}, {pipeline_mode = #tpu.pipeline_mode<synchronous>, transform_indices = @transform_6, window_bounds = array<i64: 1, 128>}, {pipeline_mode = #tpu.pipeline_mode<synchronous>, transform_indices = @transform_7, window_bounds = array<i64: 128, 4>}, {pipeline_mode = #tpu.pipeline_mode<synchronous>, transform_indices = @transform_8, window_bounds = array<i64: 4, 128>}, {pipeline_mode = #tpu.pipeline_mode<synchronous>, transform_indices = @transform_9, window_bounds = array<i64: 2, 4>}, {pipeline_mode = #tpu.pipeline_mode<synchronous>, transform_indices = @transform_10, window_bounds = array<i64: 2, 8, 128>}]} {
    %c0 = arith.constant 0 : index
    %c0_0 = arith.constant 0 : index
    %c0_1 = arith.constant 0 : index
    %0 = vector.load %arg1[%c0, %c0_0, %c0_1] : memref<2x8x768xbf16, #tpu.memory_space<vmem>>, vector<1x8x768xbf16>
    %1 = vector.shape_cast %0 : vector<1x8x768xbf16> to vector<8x768xbf16>
    %c0_2 = arith.constant 0 : index
    %c0_3 = arith.constant 0 : index
    %2 = vector.load %arg2[%c0_2, %c0_3] : memref<768x384xbf16, #tpu.memory_space<vmem>>, vector<768x384xbf16>
    %cst = arith.constant dense<0.000000e+00> : vector<8x384xf32>
    %3 = tpu.matmul %1, %2, %cst {dimension_numbers = #tpu.dot_dimension_numbers<[1], [0], [0], [1], [0, 0, 1, 1], [], []>} : vector<8x768xbf16>, vector<768x384xbf16>, vector<8x384xf32> -> vector<8x384xf32>
    %c0_4 = arith.constant 0 : index
    %c0_5 = arith.constant 0 : index
    %4 = vector.load %arg3[%c0_4, %c0_5] : memref<1x384xf32, #tpu.memory_space<vmem>>, vector<1x384xf32>
    %5 = vector.broadcast %4 : vector<1x384xf32> to vector<8x384xf32>
    %6 = arith.addf %3, %5 : vector<8x384xf32>
    %cst_6 = arith.constant dense<0.000000e+00> : vector<384xf32>
    %7 = vector.multi_reduction <add>, %6, %cst_6 [0] : vector<8x384xf32> to vector<384xf32>
    %8 = vector.shape_cast %7 : vector<384xf32> to vector<1x384xf32>
    %c0_7 = arith.constant 0 : index
    %c0_8 = arith.constant 0 : index
    %9 = vector.load %arg4[%c0_7, %c0_8] : memref<1x384xf32, #tpu.memory_space<vmem>>, vector<1x384xf32>
    %10 = arith.mulf %8, %9 : vector<1x384xf32>
    %cst_9 = arith.constant dense<0.000000e+00> : vector<1xf32>
    %11 = vector.multi_reduction <add>, %10, %cst_9 [1] : vector<1x384xf32> to vector<1xf32>
    %12 = vector.shape_cast %11 : vector<1xf32> to vector<1x1xf32>
    %cst_10 = arith.constant 3.906250e-03 : f32
    %13 = vector.broadcast %cst_10 : f32 to vector<1x1xf32>
    %14 = arith.mulf %12, %13 : vector<1x1xf32>
    %15 = arith.negf %14 : vector<1x1xf32>
    %16 = math.exp %15 : vector<1x1xf32>
    %cst_11 = arith.constant 1.000000e+00 : f32
    %17 = vector.broadcast %cst_11 : f32 to vector<1x1xf32>
    %18 = arith.addf %17, %16 : vector<1x1xf32>
    %19 = arith.divf %17, %18 : vector<1x1xf32>
    %20 = arith.mulf %14, %19 : vector<1x1xf32>
    %c0_12 = arith.constant 0 : index
    %c0_13 = arith.constant 0 : index
    %21 = vector.load %arg5[%c0_12, %c0_13] : memref<1x384xf32, #tpu.memory_space<vmem>>, vector<1x384xf32>
    %22 = vector.broadcast %20 : vector<1x1xf32> to vector<1x384xf32>
    %23 = arith.mulf %22, %21 : vector<1x384xf32>
    %24 = arith.negf %23 : vector<1x384xf32>
    %25 = math.exp %24 : vector<1x384xf32>
    %cst_14 = arith.constant 1.000000e+00 : f32
    %26 = vector.broadcast %cst_14 : f32 to vector<1x384xf32>
    %27 = arith.addf %26, %25 : vector<1x384xf32>
    %28 = arith.divf %26, %27 : vector<1x384xf32>
    %29 = vector.broadcast %28 : vector<1x384xf32> to vector<8x384xf32>
    %30 = arith.mulf %6, %29 : vector<8x384xf32>
    %31 = arith.truncf %30 : vector<8x384xf32> to vector<8x384xbf16>
    %c0_15 = arith.constant 0 : index
    %c0_16 = arith.constant 0 : index
    %32 = vector.load %arg6[%c0_15, %c0_16] : memref<384x128xbf16, #tpu.memory_space<vmem>>, vector<384x128xbf16>
    %cst_17 = arith.constant dense<0.000000e+00> : vector<8x128xf32>
    %33 = tpu.matmul %31, %32, %cst_17 {dimension_numbers = #tpu.dot_dimension_numbers<[1], [0], [0], [1], [0, 0, 1, 1], [], []>} : vector<8x384xbf16>, vector<384x128xbf16>, vector<8x128xf32> -> vector<8x128xf32>
    %c0_18 = arith.constant 0 : index
    %c0_19 = arith.constant 0 : index
    %34 = vector.load %arg7[%c0_18, %c0_19] : memref<1x128xf32, #tpu.memory_space<vmem>>, vector<1x128xf32>
    %35 = vector.broadcast %34 : vector<1x128xf32> to vector<8x128xf32>
    %36 = arith.addf %33, %35 : vector<8x128xf32>
    %c1 = arith.constant 1 : index
    %c0_20 = arith.constant 0 : index
    %c0_21 = arith.constant 0 : index
    %37 = vector.load %arg1[%c1, %c0_20, %c0_21] : memref<2x8x768xbf16, #tpu.memory_space<vmem>>, vector<1x8x768xbf16>
    %38 = vector.shape_cast %37 : vector<1x8x768xbf16> to vector<8x768xbf16>
    %c0_22 = arith.constant 0 : index
    %c0_23 = arith.constant 0 : index
    %39 = vector.load %arg2[%c0_22, %c0_23] : memref<768x384xbf16, #tpu.memory_space<vmem>>, vector<768x384xbf16>
    %cst_24 = arith.constant dense<0.000000e+00> : vector<8x384xf32>
    %40 = tpu.matmul %38, %39, %cst_24 {dimension_numbers = #tpu.dot_dimension_numbers<[1], [0], [0], [1], [0, 0, 1, 1], [], []>} : vector<8x768xbf16>, vector<768x384xbf16>, vector<8x384xf32> -> vector<8x384xf32>
    %c0_25 = arith.constant 0 : index
    %c0_26 = arith.constant 0 : index
    %41 = vector.load %arg3[%c0_25, %c0_26] : memref<1x384xf32, #tpu.memory_space<vmem>>, vector<1x384xf32>
    %42 = vector.broadcast %41 : vector<1x384xf32> to vector<8x384xf32>
    %43 = arith.addf %40, %42 : vector<8x384xf32>
    %cst_27 = arith.constant dense<0.000000e+00> : vector<384xf32>
    %44 = vector.multi_reduction <add>, %43, %cst_27 [0] : vector<8x384xf32> to vector<384xf32>
    %45 = vector.shape_cast %44 : vector<384xf32> to vector<1x384xf32>
    %c0_28 = arith.constant 0 : index
    %c0_29 = arith.constant 0 : index
    %46 = vector.load %arg4[%c0_28, %c0_29] : memref<1x384xf32, #tpu.memory_space<vmem>>, vector<1x384xf32>
    %47 = arith.mulf %45, %46 : vector<1x384xf32>
    %cst_30 = arith.constant dense<0.000000e+00> : vector<1xf32>
    %48 = vector.multi_reduction <add>, %47, %cst_30 [1] : vector<1x384xf32> to vector<1xf32>
    %49 = vector.shape_cast %48 : vector<1xf32> to vector<1x1xf32>
    %cst_31 = arith.constant 3.906250e-03 : f32
    %50 = vector.broadcast %cst_31 : f32 to vector<1x1xf32>
    %51 = arith.mulf %49, %50 : vector<1x1xf32>
    %52 = arith.negf %51 : vector<1x1xf32>
    %53 = math.exp %52 : vector<1x1xf32>
    %cst_32 = arith.constant 1.000000e+00 : f32
    %54 = vector.broadcast %cst_32 : f32 to vector<1x1xf32>
    %55 = arith.addf %54, %53 : vector<1x1xf32>
    %56 = arith.divf %54, %55 : vector<1x1xf32>
    %57 = arith.mulf %51, %56 : vector<1x1xf32>
    %c0_33 = arith.constant 0 : index
    %c0_34 = arith.constant 0 : index
    %58 = vector.load %arg5[%c0_33, %c0_34] : memref<1x384xf32, #tpu.memory_space<vmem>>, vector<1x384xf32>
    %59 = vector.broadcast %57 : vector<1x1xf32> to vector<1x384xf32>
    %60 = arith.mulf %59, %58 : vector<1x384xf32>
    %61 = arith.negf %60 : vector<1x384xf32>
    %62 = math.exp %61 : vector<1x384xf32>
    %cst_35 = arith.constant 1.000000e+00 : f32
    %63 = vector.broadcast %cst_35 : f32 to vector<1x384xf32>
    %64 = arith.addf %63, %62 : vector<1x384xf32>
    %65 = arith.divf %63, %64 : vector<1x384xf32>
    %66 = vector.broadcast %65 : vector<1x384xf32> to vector<8x384xf32>
    %67 = arith.mulf %43, %66 : vector<8x384xf32>
    %68 = arith.truncf %67 : vector<8x384xf32> to vector<8x384xbf16>
    %c0_36 = arith.constant 0 : index
    %c0_37 = arith.constant 0 : index
    %69 = vector.load %arg6[%c0_36, %c0_37] : memref<384x128xbf16, #tpu.memory_space<vmem>>, vector<384x128xbf16>
    %cst_38 = arith.constant dense<0.000000e+00> : vector<8x128xf32>
    %70 = tpu.matmul %68, %69, %cst_38 {dimension_numbers = #tpu.dot_dimension_numbers<[1], [0], [0], [1], [0, 0, 1, 1], [], []>} : vector<8x384xbf16>, vector<384x128xbf16>, vector<8x128xf32> -> vector<8x128xf32>
    %c0_39 = arith.constant 0 : index
    %c0_40 = arith.constant 0 : index
    %71 = vector.load %arg7[%c0_39, %c0_40] : memref<1x128xf32, #tpu.memory_space<vmem>>, vector<1x128xf32>
    %72 = vector.broadcast %71 : vector<1x128xf32> to vector<8x128xf32>
    %73 = arith.addf %70, %72 : vector<8x128xf32>
    %cst_41 = arith.constant 0.000000e+00 : f32
    %74 = vector.broadcast %cst_41 : f32 to vector<1x4xf32>
    %cst_42 = arith.constant dense<0.000000e+00> : vector<128xf32>
    %75 = vector.multi_reduction <add>, %36, %cst_42 [0] : vector<8x128xf32> to vector<128xf32>
    %76 = vector.shape_cast %75 : vector<128xf32> to vector<1x128xf32>
    %c0_43 = arith.constant 0 : index
    %c0_44 = arith.constant 0 : index
    %77 = vector.load %arg8[%c0_43, %c0_44] : memref<128x4xf32, #tpu.memory_space<vmem>>, vector<128x4xf32>
    %cst_45 = arith.constant dense<0.000000e+00> : vector<1x4xf32>
    %78 = tpu.matmul %76, %77, %cst_45 {dimension_numbers = #tpu.dot_dimension_numbers<[1], [0], [0], [1], [0, 0, 1, 1], [], []>} : vector<1x128xf32>, vector<128x4xf32>, vector<1x4xf32> -> vector<1x4xf32>
    %79 = arith.addf %74, %78 : vector<1x4xf32>
    %cst_46 = arith.constant dense<0.000000e+00> : vector<128xf32>
    %80 = vector.multi_reduction <add>, %73, %cst_46 [0] : vector<8x128xf32> to vector<128xf32>
    %81 = vector.shape_cast %80 : vector<128xf32> to vector<1x128xf32>
    %c0_47 = arith.constant 0 : index
    %c0_48 = arith.constant 0 : index
    %82 = vector.load %arg8[%c0_47, %c0_48] : memref<128x4xf32, #tpu.memory_space<vmem>>, vector<128x4xf32>
    %cst_49 = arith.constant dense<0.000000e+00> : vector<1x4xf32>
    %83 = tpu.matmul %81, %82, %cst_49 {dimension_numbers = #tpu.dot_dimension_numbers<[1], [0], [0], [1], [0, 0, 1, 1], [], []>} : vector<1x128xf32>, vector<128x4xf32>, vector<1x4xf32> -> vector<1x4xf32>
    %84 = arith.addf %79, %83 : vector<1x4xf32>
    %cst_50 = arith.constant 0.001953125 : f32
    %85 = vector.broadcast %cst_50 : f32 to vector<1x4xf32>
    %86 = arith.mulf %84, %85 : vector<1x4xf32>
    %c0_51 = arith.constant 0 : index
    %c0_52 = arith.constant 0 : index
    %87 = vector.load %arg9[%c0_51, %c0_52] : memref<4x128xf32, #tpu.memory_space<vmem>>, vector<4x128xf32>
    %cst_53 = arith.constant dense<0.000000e+00> : vector<1x128xf32>
    %88 = tpu.matmul %86, %87, %cst_53 {dimension_numbers = #tpu.dot_dimension_numbers<[1], [0], [0], [1], [0, 0, 1, 1], [], []>} : vector<1x4xf32>, vector<4x128xf32>, vector<1x128xf32> -> vector<1x128xf32>
    %cst_54 = arith.constant 0.000000e+00 : f32
    %89 = vector.broadcast %cst_54 : f32 to vector<1x4xf32>
    %90 = vector.broadcast %88 : vector<1x128xf32> to vector<8x128xf32>
    %91 = arith.subf %36, %90 : vector<8x128xf32>
    %92 = arith.mulf %91, %91 : vector<8x128xf32>
    %cst_55 = arith.constant dense<0.000000e+00> : vector<128xf32>
    %93 = vector.multi_reduction <add>, %92, %cst_55 [0] : vector<8x128xf32> to vector<128xf32>
    %94 = vector.shape_cast %93 : vector<128xf32> to vector<1x128xf32>
    %c0_56 = arith.constant 0 : index
    %c0_57 = arith.constant 0 : index
    %95 = vector.load %arg8[%c0_56, %c0_57] : memref<128x4xf32, #tpu.memory_space<vmem>>, vector<128x4xf32>
    %cst_58 = arith.constant dense<0.000000e+00> : vector<1x4xf32>
    %96 = tpu.matmul %94, %95, %cst_58 {dimension_numbers = #tpu.dot_dimension_numbers<[1], [0], [0], [1], [0, 0, 1, 1], [], []>} : vector<1x128xf32>, vector<128x4xf32>, vector<1x4xf32> -> vector<1x4xf32>
    %97 = arith.addf %89, %96 : vector<1x4xf32>
    %98 = vector.broadcast %88 : vector<1x128xf32> to vector<8x128xf32>
    %99 = arith.subf %73, %98 : vector<8x128xf32>
    %100 = arith.mulf %99, %99 : vector<8x128xf32>
    %cst_59 = arith.constant dense<0.000000e+00> : vector<128xf32>
    %101 = vector.multi_reduction <add>, %100, %cst_59 [0] : vector<8x128xf32> to vector<128xf32>
    %102 = vector.shape_cast %101 : vector<128xf32> to vector<1x128xf32>
    %c0_60 = arith.constant 0 : index
    %c0_61 = arith.constant 0 : index
    %103 = vector.load %arg8[%c0_60, %c0_61] : memref<128x4xf32, #tpu.memory_space<vmem>>, vector<128x4xf32>
    %cst_62 = arith.constant dense<0.000000e+00> : vector<1x4xf32>
    %104 = tpu.matmul %102, %103, %cst_62 {dimension_numbers = #tpu.dot_dimension_numbers<[1], [0], [0], [1], [0, 0, 1, 1], [], []>} : vector<1x128xf32>, vector<128x4xf32>, vector<1x4xf32> -> vector<1x4xf32>
    %105 = arith.addf %97, %104 : vector<1x4xf32>
    %cst_63 = arith.constant 0.001953125 : f32
    %106 = vector.broadcast %cst_63 : f32 to vector<1x4xf32>
    %107 = arith.mulf %105, %106 : vector<1x4xf32>
    %c0_64 = arith.constant 0 : index
    %c0_65 = arith.constant 0 : index
    %108 = vector.load %arg10[%c0_64, %c0_65] : memref<2x4xf32, #tpu.memory_space<vmem>>, vector<2x4xf32>
    %109 = vector.extract_strided_slice %108 {offsets = [0, 0], sizes = [1, 4], strides = [1, 1]} : vector<2x4xf32> to vector<1x4xf32>
    %cst_66 = arith.constant 9.99999974E-6 : f32
    %110 = vector.broadcast %cst_66 : f32 to vector<1x4xf32>
    %111 = arith.addf %107, %110 : vector<1x4xf32>
    %112 = math.rsqrt %111 : vector<1x4xf32>
    %113 = arith.mulf %109, %112 : vector<1x4xf32>
    %114 = vector.extract_strided_slice %108 {offsets = [1, 0], sizes = [1, 4], strides = [1, 1]} : vector<2x4xf32> to vector<1x4xf32>
    %115 = arith.mulf %86, %113 : vector<1x4xf32>
    %116 = arith.subf %114, %115 : vector<1x4xf32>
    %c0_67 = arith.constant 0 : index
    %c0_68 = arith.constant 0 : index
    %117 = vector.load %arg9[%c0_67, %c0_68] : memref<4x128xf32, #tpu.memory_space<vmem>>, vector<4x128xf32>
    %cst_69 = arith.constant dense<0.000000e+00> : vector<1x128xf32>
    %118 = tpu.matmul %113, %117, %cst_69 {dimension_numbers = #tpu.dot_dimension_numbers<[1], [0], [0], [1], [0, 0, 1, 1], [], []>} : vector<1x4xf32>, vector<4x128xf32>, vector<1x128xf32> -> vector<1x128xf32>
    %c0_70 = arith.constant 0 : index
    %c0_71 = arith.constant 0 : index
    %119 = vector.load %arg9[%c0_70, %c0_71] : memref<4x128xf32, #tpu.memory_space<vmem>>, vector<4x128xf32>
    %cst_72 = arith.constant dense<0.000000e+00> : vector<1x128xf32>
    %120 = tpu.matmul %116, %119, %cst_72 {dimension_numbers = #tpu.dot_dimension_numbers<[1], [0], [0], [1], [0, 0, 1, 1], [], []>} : vector<1x4xf32>, vector<4x128xf32>, vector<1x128xf32> -> vector<1x128xf32>
    %121 = vector.broadcast %118 : vector<1x128xf32> to vector<8x128xf32>
    %122 = arith.mulf %36, %121 : vector<8x128xf32>
    %123 = vector.broadcast %120 : vector<1x128xf32> to vector<8x128xf32>
    %124 = arith.addf %122, %123 : vector<8x128xf32>
    %cst_73 = arith.constant 0.000000e+00 : f32
    %125 = vector.broadcast %cst_73 : f32 to vector<8x128xf32>
    %126 = arith.maximumf %124, %125 : vector<8x128xf32>
    %c0_74 = arith.constant 0 : index
    %c0_75 = arith.constant 0 : index
    %c0_76 = arith.constant 0 : index
    %127 = vector.load %arg11[%c0_74, %c0_75, %c0_76] : memref<2x8x128xf32, #tpu.memory_space<vmem>>, vector<1x8x128xf32>
    %128 = vector.shape_cast %127 : vector<1x8x128xf32> to vector<8x128xf32>
    %129 = vector.shape_cast %126 : vector<8x128xf32> to vector<1x8x128xf32>
    tpu.vector_store %arg11[%c0_74, %c0_75, %c0_76], %129 {strides = array<i32>} : memref<2x8x128xf32, #tpu.memory_space<vmem>>, vector<1x8x128xf32>,
    %130 = vector.broadcast %118 : vector<1x128xf32> to vector<8x128xf32>
    %131 = arith.mulf %73, %130 : vector<8x128xf32>
    %132 = vector.broadcast %120 : vector<1x128xf32> to vector<8x128xf32>
    %133 = arith.addf %131, %132 : vector<8x128xf32>
    %cst_77 = arith.constant 0.000000e+00 : f32
    %134 = vector.broadcast %cst_77 : f32 to vector<8x128xf32>
    %135 = arith.maximumf %133, %134 : vector<8x128xf32>
    %c1_78 = arith.constant 1 : index
    %c0_79 = arith.constant 0 : index
    %c0_80 = arith.constant 0 : index
    %136 = vector.load %arg11[%c1_78, %c0_79, %c0_80] : memref<2x8x128xf32, #tpu.memory_space<vmem>>, vector<1x8x128xf32>
    %137 = vector.shape_cast %136 : vector<1x8x128xf32> to vector<8x128xf32>
    %138 = vector.shape_cast %135 : vector<8x128xf32> to vector<1x8x128xf32>
    tpu.vector_store %arg11[%c1_78, %c0_79, %c0_80], %138 {strides = array<i32>} : memref<2x8x128xf32, #tpu.memory_space<vmem>>, vector<1x8x128xf32>,
    return
  }
  func.func @transform_0(%arg0: i32) -> (i32, i32, i32) {
    %c0_i32 = arith.constant 0 : i32
    %c0_i32_0 = arith.constant 0 : i32
    %c0_i32_1 = arith.constant 0 : i32
    %c0_i32_2 = arith.constant 0 : i32
    return %c0_i32, %c0_i32_0, %c0_i32_1 : i32, i32, i32
  }
  func.func @transform_1(%arg0: i32) -> (i32, i32) {
    %c0_i32 = arith.constant 0 : i32
    %c0_i32_0 = arith.constant 0 : i32
    %c0_i32_1 = arith.constant 0 : i32
    return %c0_i32, %c0_i32_0 : i32, i32
  }
  func.func @transform_2(%arg0: i32) -> (i32, i32) {
    %c0_i32 = arith.constant 0 : i32
    %c0_i32_0 = arith.constant 0 : i32
    %c0_i32_1 = arith.constant 0 : i32
    return %c0_i32, %c0_i32_0 : i32, i32
  }
  func.func @transform_3(%arg0: i32) -> (i32, i32) {
    %c0_i32 = arith.constant 0 : i32
    %c0_i32_0 = arith.constant 0 : i32
    %c0_i32_1 = arith.constant 0 : i32
    return %c0_i32, %c0_i32_0 : i32, i32
  }
  func.func @transform_4(%arg0: i32) -> (i32, i32) {
    %c0_i32 = arith.constant 0 : i32
    %c0_i32_0 = arith.constant 0 : i32
    %c0_i32_1 = arith.constant 0 : i32
    return %c0_i32, %c0_i32_0 : i32, i32
  }
  func.func @transform_5(%arg0: i32) -> (i32, i32) {
    %c0_i32 = arith.constant 0 : i32
    %c0_i32_0 = arith.constant 0 : i32
    %c0_i32_1 = arith.constant 0 : i32
    return %c0_i32, %c0_i32_0 : i32, i32
  }
  func.func @transform_6(%arg0: i32) -> (i32, i32) {
    %c0_i32 = arith.constant 0 : i32
    %c0_i32_0 = arith.constant 0 : i32
    %c0_i32_1 = arith.constant 0 : i32
    return %c0_i32, %c0_i32_0 : i32, i32
  }
  func.func @transform_7(%arg0: i32) -> (i32, i32) {
    %c0_i32 = arith.constant 0 : i32
    %c0_i32_0 = arith.constant 0 : i32
    %c0_i32_1 = arith.constant 0 : i32
    return %c0_i32, %c0_i32_0 : i32, i32
  }
  func.func @transform_8(%arg0: i32) -> (i32, i32) {
    %c0_i32 = arith.constant 0 : i32
    %c0_i32_0 = arith.constant 0 : i32
    %c0_i32_1 = arith.constant 0 : i32
    return %c0_i32, %c0_i32_0 : i32, i32
  }
  func.func @transform_9(%arg0: i32) -> (i32, i32) {
    %c0_i32 = arith.constant 0 : i32
    %c0_i32_0 = arith.constant 0 : i32
    %c0_i32_1 = arith.constant 0 : i32
    return %c0_i32, %c0_i32_0 : i32, i32
  }
  func.func @transform_10(%arg0: i32) -> (i32, i32, i32) {
    %c0_i32 = arith.constant 0 : i32
    %c0_i32_0 = arith.constant 0 : i32
    %c0_i32_1 = arith.constant 0 : i32
    %c0_i32_2 = arith.constant 0 : i32
    return %c0_i32, %c0_i32_0, %c0_i32_1 : i32, i32, i32
  }
}

</mosaic_0001>

<llo_original>
// kernel: msffe_apply.1
$region0: #{msffe_apply.1}
  #allocation0 [shape = 'u32[]', space=smem, size = 0x4, offset = 0x4, fixed_abs, tag = 'smem constant byte address 0x4 - core index']
  #allocation1 [shape = 'u32[72,128]{1,0:T(1,128)}', space=vmem, size = 0x9000, scoped, tag = 'internal scratch']
  %s0 = inlined_call_operand.vmem [shape: bf16[2,8,768], index: 0, kind: input, shape index: {}]
  %s1 = inlined_call_operand.hbm [shape: bf16[768,384], index: 1, kind: input, shape index: {}]
  %s2 = inlined_call_operand.vmem [shape: f32[1,384], index: 2, kind: input, shape index: {}]
  %s3 = inlined_call_operand.vmem [shape: f32[1,384], index: 3, kind: input, shape index: {}]
  %s4 = inlined_call_operand.vmem [shape: f32[1,384], index: 4, kind: input, shape index: {}]
  %s5 = inlined_call_operand.vmem [shape: bf16[384,128], index: 5, kind: input, shape index: {}]
  %s6 = inlined_call_operand.vmem [shape: f32[1,128], index: 6, kind: input, shape index: {}]
  %s7 = inlined_call_operand.vmem [shape: f32[128,4], index: 7, kind: input, shape index: {}]
  %s8 = inlined_call_operand.vmem [shape: f32[4,128], index: 8, kind: input, shape index: {}]
  %s9 = inlined_call_operand.vmem [shape: f32[2,4], index: 9, kind: input, shape index: {}]
  %s10 = inlined_call_operand.vmem [shape: f32[2,8,128], index: 10, kind: output, shape index: {}]
  %s11 = sld [smem:[#allocation0]]
  $region54: #{msffe_apply.1} parent=0
    _
  %s13 = ssub.s32 1, %s11
  %s14 = scalar_select 0, %s13, %s11
  $region1: #{msffe_apply.1} parent=0
    #allocation2 [shape = 'u8[589824]{0}', space=vmem, size = 0x90000, scoped, tag = 'input window, operand 1, single buffered']
    #allocation3 [shape = 's32[1]{0}', space=sflag, size = 0x4, scoped, tag = 'scoped memory for msffe_apply.1']
    %15 = vsyncpa [#allocation3], 0
    // Predicated region
    $region2: #{msffe_apply.1} parent=1 // pred_check
      _
    $region3: #{msffe_apply.1} parent=1 // pred_check_branch
      %17 = sbr.rel (0) target = $region5
    $region4: #{msffe_apply.1} parent=1 // pred_region
      _
    $region5: #{msffe_apply.1} parent=1 // pred_fallthru
      _
    // Predicated region
    $region6: #{msffe_apply.1} parent=1 // pred_check
      _
    $region7: #{msffe_apply.1} parent=1 // pred_check_branch
      %19 = sbr.rel (0) target = $region9
    $region8: #{msffe_apply.1} parent=1 // pred_region
      %21 = vsyncadd [#allocation3], 0
      %s22 = sshll.u32 %s1, 4
      %s23 = int_to_ptr.hbm [resolvable:$true] %s22
      %s24 = sshll.u32 [#allocation2], 4
      %s25 = int_to_ptr.vmem [resolvable:$true] %s24
      %30 = dma.hbm_to_vmem [thread:$0]  %s23, 18432, %s25, [#allocation3], 192, 192, 12
    $region9: #{msffe_apply.1} parent=1 // pred_fallthru
      _
    // Predicated region
    $region10: #{msffe_apply.1} parent=1 // pred_check
      _
    $region11: #{msffe_apply.1} parent=1 // pred_check_branch
      %32 = sbr.rel (0) target = $region13
    $region12: #{msffe_apply.1} parent=1 // pred_region
      _
    $region13: #{msffe_apply.1} parent=1 // pred_fallthru
      _
    // Predicated region
    $region14: #{msffe_apply.1} parent=1 // pred_check
      _
    $region15: #{msffe_apply.1} parent=1 // pred_check_branch
      %34 = sbr.rel (0) target = $region17
    $region16: #{msffe_apply.1} parent=1 // pred_region
      _
    $region17: #{msffe_apply.1} parent=1 // pred_fallthru
      _
    // Predicated region
    $region18: #{msffe_apply.1} parent=1 // pred_check
      _
    $region19: #{msffe_apply.1} parent=1 // pred_check_branch
      %36 = sbr.rel (0) target = $region21
    $region20: #{msffe_apply.1} parent=1 // pred_region
      _
    $region21: #{msffe_apply.1} parent=1 // pred_fallthru
      _
    // Predicated region
    $region22: #{msffe_apply.1} parent=1 // pred_check
      _
    $region23: #{msffe_apply.1} parent=1 // pred_check_branch
      %38 = sbr.rel (0) target = $region25
    $region24: #{msffe_apply.1} parent=1 // pred_region
      _
    $region25: #{msffe_apply.1} parent=1 // pred_fallthru
      _
    // Predicated region
    $region26: #{msffe_apply.1} parent=1 // pred_check
      _
    $region27: #{msffe_apply.1} parent=1 // pred_check_branch
      %40 = sbr.rel (0) target = $region29
    $region28: #{msffe_apply.1} parent=1 // pred_region
      _
    $region29: #{msffe_apply.1} parent=1 // pred_fallthru
      _
    // Predicated region
    $region30: #{msffe_apply.1} parent=1 // pred_check
      _
    $region31: #{msffe_apply.1} parent=1 // pred_check_branch
      %42 = sbr.rel (0) target = $region33
    $region32: #{msffe_apply.1} parent=1 // pred_region
      _
    $region33: #{msffe_apply.1} parent=1 // pred_fallthru
      _
    // Predicated region
    $region34: #{msffe_apply.1} parent=1 // pred_check
      _
    $region35: #{msffe_apply.1} parent=1 // pred_check_branch
      %44 = sbr.rel (0) target = $region37
    $region36: #{msffe_apply.1} parent=1 // pred_region
      _
    $region37: #{msffe_apply.1} parent=1 // pred_fallthru
      _
    // Predicated region
    $region38: #{msffe_apply.1} parent=1 // pred_check
      _
    $region39: #{msffe_apply.1} parent=1 // pred_check_branch
      %46 = sbr.rel (0) target = $region41
    $region40: #{msffe_apply.1} parent=1 // pred_region
      _
    $region41: #{msffe_apply.1} parent=1 // pred_fallthru
      _
    // Predicated region
    $region42: #{msffe_apply.1} parent=1 // pred_check
      _
    $region43: #{msffe_apply.1} parent=1 // pred_check_branch
      %48 = sbr.rel (0) target = $region45
    $region44: #{msffe_apply.1} parent=1 // pred_region
      %50 = dma.done [#allocation3], 18432
    $region45: #{msffe_apply.1} parent=1 // pred_fallthru
      _
    %v51 = vld [vmem:[%s0] sm:$0xff]
    %v52 = vld [vmem:[%s0 + $0x8] sm:$0xff]
    %v53 = vld [vmem:[%s0 + $0x10] sm:$0xff]
    %v54 = vld [vmem:[#allocation2] sm:$0xff]
    %v55 = vld [vmem:[#allocation2 + $0x8] sm:$0xf]
    %v56 = vld [vmem:[#allocation2 + $0xc] sm:$0xff]
    %v57 = vld [vmem:[#allocation2 + $0x14] sm:$0xf]
    %v58 = vld [vmem:[#allocation2 + $0x18] sm:$0xff]
    %v59 = vld [vmem:[#allocation2 + $0x20] sm:$0xf]
    %v60 = vld [vmem:[#allocation2 + $0x24] sm:$0xff]
    %v61 = vld [vmem:[#allocation2 + $0x2c] sm:$0xf]
    %v62 = vld [vmem:[#allocation2 + $0x30] sm:$0xff]
    %v63 = vld [vmem:[#allocation2 + $0x38] sm:$0xf]
    %v64 = vld [vmem:[#allocation2 + $0x3c] sm:$0xff]
    %v65 = vld [vmem:[#allocation2 + $0x44] sm:$0xf]
    %v66 = vld [vmem:[#allocation2 + $0x48] sm:$0xff]
    %v67 = vld [vmem:[#allocation2 + $0x50] sm:$0xf]
    %v68 = vld [vmem:[#allocation2 + $0x54] sm:$0xff]
    %v69 = vld [vmem:[#allocation2 + $0x5c] sm:$0xf]
    %v70 = vld [vmem:[#allocation2 + $0x60] sm:$0xff]
    %v71 = vld [vmem:[#allocation2 + $0x68] sm:$0xf]
    %v72 = vld [vmem:[#allocation2 + $0x6c] sm:$0xff]
    %v73 = vld [vmem:[#allocation2 + $0x74] sm:$0xf]
    %v74 = vld [vmem:[#allocation2 + $0x78] sm:$0xff]
    %v75 = vld [vmem:[#allocation2 + $0x80] sm:$0xf]
    %v76 = vld [vmem:[#allocation2 + $0x84] sm:$0xff]
    %v77 = vld [vmem:[#allocation2 + $0x8c] sm:$0xf]
    %v78 = vld [vmem:[#allocation2 + $0x90] sm:$0xff]
    %v79 = vld [vmem:[#allocation2 + $0x98] sm:$0xf]
    %v80 = vld [vmem:[#allocation2 + $0x9c] sm:$0xff]
    %v81 = vld [vmem:[#allocation2 + $0xa4] sm:$0xf]
    %v82 = vld [vmem:[#allocation2 + $0xa8] sm:$0xff]
    %v83 = vld [vmem:[#allocation2 + $0xb0] sm:$0xf]
    %v84 = vld [vmem:[#allocation2 + $0xb4] sm:$0xff]
    %v85 = vld [vmem:[#allocation2 + $0xbc] sm:$0xf]
    %v86 = vld [vmem:[#allocation2 + $0xc0] sm:$0xff]
    %v87 = vld [vmem:[#allocation2 + $0xc8] sm:$0xf]
    %v88 = vld [vmem:[#allocation2 + $0xcc] sm:$0xff]
    %v89 = vld [vmem:[#allocation2 + $0xd4] sm:$0xf]
    %v90 = vld [vmem:[#allocation2 + $0xd8] sm:$0xff]
    %v91 = vld [vmem:[#allocation2 + $0xe0] sm:$0xf]
    %v92 = vld [vmem:[#allocation2 + $0xe4] sm:$0xff]
    %v93 = vld [vmem:[#allocation2 + $0xec] sm:$0xf]
    %v94 = vld [vmem:[#allocation2 + $0xf0] sm:$0xff]
    %v95 = vld [vmem:[#allocation2 + $0xf8] sm:$0xf]
    %v96 = vld [vmem:[#allocation2 + $0xfc] sm:$0xff]
    %v97 = vld [vmem:[#allocation2 + $0x104] sm:$0xf]
    %v98 = vld [vmem:[#allocation2 + $0x108] sm:$0xff]
    %v99 = vld [vmem:[#allocation2 + $0x110] sm:$0xf]
    %v100 = vld [vmem:[#allocation2 + $0x114] sm:$0xff]
    %v101 = vld [vmem:[#allocation2 + $0x11c] sm:$0xf]
    %v102 = vld [vmem:[#allocation2 + $0x120] sm:$0xff]
    %v103 = vld [vmem:[#allocation2 + $0x128] sm:$0xf]
    %v104 = vld [vmem:[#allocation2 + $0x12c] sm:$0xff]
    %v105 = vld [vmem:[#allocation2 + $0x134] sm:$0xf]
    %v106 = vld [vmem:[#allocation2 + $0x138] sm:$0xff]
    %v107 = vld [vmem:[#allocation2 + $0x140] sm:$0xf]
    %v108 = vld [vmem:[#allocation2 + $0x144] sm:$0xff]
    %v109 = vld [vmem:[#allocation2 + $0x14c] sm:$0xf]
    %v110 = vld [vmem:[#allocation2 + $0x150] sm:$0xff]
    %v111 = vld [vmem:[#allocation2 + $0x158] sm:$0xf]
    %v112 = vld [vmem:[#allocation2 + $0x15c] sm:$0xff]
    %v113 = vld [vmem:[#allocation2 + $0x164] sm:$0xf]
    %v114 = vld [vmem:[#allocation2 + $0x168] sm:$0xff]
    %v115 = vld [vmem:[#allocation2 + $0x170] sm:$0xf]
    %v116 = vld [vmem:[#allocation2 + $0x174] sm:$0xff]
    %v117 = vld [vmem:[#allocation2 + $0x17c] sm:$0xf]
    %v118 = vld [vmem:[#allocation2 + $0x180] sm:$0xff]
    %v119 = vld [vmem:[#allocation2 + $0x188] sm:$0xf]
    %v120 = vld [vmem:[#allocation2 + $0x18c] sm:$0xff]
    %v121 = vld [vmem:[#allocation2 + $0x194] sm:$0xf]
    %v122 = vld [vmem:[#allocation2 + $0x198] sm:$0xff]
    %v123 = vld [vmem:[#allocation2 + $0x1a0] sm:$0xf]
    %v124 = vld [vmem:[#allocation2 + $0x1a4] sm:$0xff]
    %v125 = vld [vmem:[#allocation2 + $0x1ac] sm:$0xf]
    %v126 = vld [vmem:[#allocation2 + $0x1b0] sm:$0xff]
    %v127 = vld [vmem:[#allocation2 + $0x1b8] sm:$0xf]
    %v128 = vld [vmem:[#allocation2 + $0x1bc] sm:$0xff]
    %v129 = vld [vmem:[#allocation2 + $0x1c4] sm:$0xf]
    %v130 = vld [vmem:[#allocation2 + $0x1c8] sm:$0xff]
    %v131 = vld [vmem:[#allocation2 + $0x1d0] sm:$0xf]
    %v132 = vld [vmem:[#allocation2 + $0x1d4] sm:$0xff]
    %v133 = vld [vmem:[#allocation2 + $0x1dc] sm:$0xf]
    %v134 = vld [vmem:[#allocation2 + $0x1e0] sm:$0xff]
    %v135 = vld [vmem:[#allocation2 + $0x1e8] sm:$0xf]
    %v136 = vld [vmem:[#allocation2 + $0x1ec] sm:$0xff]
    %v137 = vld [vmem:[#allocation2 + $0x1f4] sm:$0xf]
    %v138 = vld [vmem:[#allocation2 + $0x1f8] sm:$0xff]
    %v139 = vld [vmem:[#allocation2 + $0x200] sm:$0xf]
    %v140 = vld [vmem:[#allocation2 + $0x204] sm:$0xff]
    %v141 = vld [vmem:[#allocation2 + $0x20c] sm:$0xf]
    %v142 = vld [vmem:[#allocation2 + $0x210] sm:$0xff]
    %v143 = vld [vmem:[#allocation2 + $0x218] sm:$0xf]
    %v144 = vld [vmem:[#allocation2 + $0x21c] sm:$0xff]
    %v145 = vld [vmem:[#allocation2 + $0x224] sm:$0xf]
    %v146 = vld [vmem:[#allocation2 + $0x228] sm:$0xff]
    %v147 = vld [vmem:[#allocation2 + $0x230] sm:$0xf]
    %v148 = vld [vmem:[#allocation2 + $0x234] sm:$0xff]
    %v149 = vld [vmem:[#allocation2 + $0x23c] sm:$0xf]
    %v150 = vld [vmem:[#allocation2 + $0x240] sm:$0xff]
    %v151 = vld [vmem:[#allocation2 + $0x248] sm:$0xf]
    %v152 = vld [vmem:[#allocation2 + $0x24c] sm:$0xff]
    %v153 = vld [vmem:[#allocation2 + $0x254] sm:$0xf]
    %v154 = vld [vmem:[#allocation2 + $0x258] sm:$0xff]
    %v155 = vld [vmem:[#allocation2 + $0x260] sm:$0xf]
    %v156 = vld [vmem:[#allocation2 + $0x264] sm:$0xff]
    %v157 = vld [vmem:[#allocation2 + $0x26c] sm:$0xf]
    %v158 = vld [vmem:[#allocation2 + $0x270] sm:$0xff]
    %v159 = vld [vmem:[#allocation2 + $0x278] sm:$0xf]
    %v160 = vld [vmem:[#allocation2 + $0x27c] sm:$0xff]
    %v161 = vld [vmem:[#allocation2 + $0x284] sm:$0xf]
    %v162 = vld [vmem:[#allocation2 + $0x288] sm:$0xff]
    %v163 = vld [vmem:[#allocation2 + $0x290] sm:$0xf]
    %v164 = vld [vmem:[#allocation2 + $0x294] sm:$0xff]
    %v165 = vld [vmem:[#allocation2 + $0x29c] sm:$0xf]
    %v166 = vld [vmem:[#allocation2 + $0x2a0] sm:$0xff]
    %v167 = vld [vmem:[#allocation2 + $0x2a8] sm:$0xf]
    %v168 = vld [vmem:[#allocation2 + $0x2ac] sm:$0xff]
    %v169 = vld [vmem:[#allocation2 + $0x2b4] sm:$0xf]
    %v170 = vld [vmem:[#allocation2 + $0x2b8] sm:$0xff]
    %v171 = vld [vmem:[#allocation2 + $0x2c0] sm:$0xf]
    %v172 = vld [vmem:[#allocation2 + $0x2c4] sm:$0xff]
    %v173 = vld [vmem:[#allocation2 + $0x2cc] sm:$0xf]
    %v174 = vld [vmem:[#allocation2 + $0x2d0] sm:$0xff]
    %v175 = vld [vmem:[#allocation2 + $0x2d8] sm:$0xf]
    %v176 = vld [vmem:[#allocation2 + $0x2dc] sm:$0xff]
    %v177 = vld [vmem:[#allocation2 + $0x2e4] sm:$0xf]
    %v178 = vld [vmem:[#allocation2 + $0x2e8] sm:$0xff]
    %v179 = vld [vmem:[#allocation2 + $0x2f0] sm:$0xf]
    %v180 = vld [vmem:[#allocation2 + $0x2f4] sm:$0xff]
    %v181 = vld [vmem:[#allocation2 + $0x2fc] sm:$0xf]
    %v182 = vld [vmem:[#allocation2 + $0x300] sm:$0xff]
    %v183 = vld [vmem:[#allocation2 + $0x308] sm:$0xf]
    %v184 = vld [vmem:[#allocation2 + $0x30c] sm:$0xff]
    %v185 = vld [vmem:[#allocation2 + $0x314] sm:$0xf]
    %v186 = vld [vmem:[#allocation2 + $0x318] sm:$0xff]
    %v187 = vld [vmem:[#allocation2 + $0x320] sm:$0xf]
    %v188 = vld [vmem:[#allocation2 + $0x324] sm:$0xff]
    %v189 = vld [vmem:[#allocation2 + $0x32c] sm:$0xf]
    %v190 = vld [vmem:[#allocation2 + $0x330] sm:$0xff]
    %v191 = vld [vmem:[#allocation2 + $0x338] sm:$0xf]
    %v192 = vld [vmem:[#allocation2 + $0x33c] sm:$0xff]
    %v193 = vld [vmem:[#allocation2 + $0x344] sm:$0xf]
    %v194 = vld [vmem:[#allocation2 + $0x348] sm:$0xff]
    %v195 = vld [vmem:[#allocation2 + $0x350] sm:$0xf]
    %v196 = vld [vmem:[#allocation2 + $0x354] sm:$0xff]
    %v197 = vld [vmem:[#allocation2 + $0x35c] sm:$0xf]
    %v198 = vld [vmem:[#allocation2 + $0x360] sm:$0xff]
    %v199 = vld [vmem:[#allocation2 + $0x368] sm:$0xf]
    %v200 = vld [vmem:[#allocation2 + $0x36c] sm:$0xff]
    %v201 = vld [vmem:[#allocation2 + $0x374] sm:$0xf]
    %v202 = vld [vmem:[#allocation2 + $0x378] sm:$0xff]
    %v203 = vld [vmem:[#allocation2 + $0x380] sm:$0xf]
    %v204 = vld [vmem:[#allocation2 + $0x384] sm:$0xff]
    %v205 = vld [vmem:[#allocation2 + $0x38c] sm:$0xf]
    %v206 = vld [vmem:[#allocation2 + $0x390] sm:$0xff]
    %v207 = vld [vmem:[#allocation2 + $0x398] sm:$0xf]
    %v208 = vld [vmem:[#allocation2 + $0x39c] sm:$0xff]
    %v209 = vld [vmem:[#allocation2 + $0x3a4] sm:$0xf]
    %v210 = vld [vmem:[#allocation2 + $0x3a8] sm:$0xff]
    %v211 = vld [vmem:[#allocation2 + $0x3b0] sm:$0xf]
    %v212 = vld [vmem:[#allocation2 + $0x3b4] sm:$0xff]
    %v213 = vld [vmem:[#allocation2 + $0x3bc] sm:$0xf]
    %v214 = vld [vmem:[#allocation2 + $0x3c0] sm:$0xff]
    %v215 = vld [vmem:[#allocation2 + $0x3c8] sm:$0xf]
    %v216 = vld [vmem:[#allocation2 + $0x3cc] sm:$0xff]
    %v217 = vld [vmem:[#allocation2 + $0x3d4] sm:$0xf]
    %v218 = vld [vmem:[#allocation2 + $0x3d8] sm:$0xff]
    %v219 = vld [vmem:[#allocation2 + $0x3e0] sm:$0xf]
    %v220 = vld [vmem:[#allocation2 + $0x3e4] sm:$0xff]
    %v221 = vld [vmem:[#allocation2 + $0x3ec] sm:$0xf]
    %v222 = vld [vmem:[#allocation2 + $0x3f0] sm:$0xff]
    %v223 = vld [vmem:[#allocation2 + $0x3f8] sm:$0xf]
    %v224 = vld [vmem:[#allocation2 + $0x3fc] sm:$0xff]
    %v225 = vld [vmem:[#allocation2 + $0x404] sm:$0xf]
    %v226 = vld [vmem:[#allocation2 + $0x408] sm:$0xff]
    %v227 = vld [vmem:[#allocation2 + $0x410] sm:$0xf]
    %v228 = vld [vmem:[#allocation2 + $0x414] sm:$0xff]
    %v229 = vld [vmem:[#allocation2 + $0x41c] sm:$0xf]
    %v230 = vld [vmem:[#allocation2 + $0x420] sm:$0xff]
    %v231 = vld [vmem:[#allocation2 + $0x428] sm:$0xf]
    %v232 = vld [vmem:[#allocation2 + $0x42c] sm:$0xff]
    %v233 = vld [vmem:[#allocation2 + $0x434] sm:$0xf]
    %v234 = vld [vmem:[#allocation2 + $0x438] sm:$0xff]
    %v235 = vld [vmem:[#allocation2 + $0x440] sm:$0xf]
    %v236 = vld [vmem:[#allocation2 + $0x444] sm:$0xff]
    %v237 = vld [vmem:[#allocation2 + $0x44c] sm:$0xf]
    %v238 = vld [vmem:[#allocation2 + $0x450] sm:$0xff]
    %v239 = vld [vmem:[#allocation2 + $0x458] sm:$0xf]
    %v240 = vld [vmem:[#allocation2 + $0x45c] sm:$0xff]
    %v241 = vld [vmem:[#allocation2 + $0x464] sm:$0xf]
    %v242 = vld [vmem:[#allocation2 + $0x468] sm:$0xff]
    %v243 = vld [vmem:[#allocation2 + $0x470] sm:$0xf]
    %v244 = vld [vmem:[#allocation2 + $0x474] sm:$0xff]
    %v245 = vld [vmem:[#allocation2 + $0x47c] sm:$0xf]
    %v246 = vld [vmem:[%s2] sm:$0x7]
    %v248 = vperm.slane %v246, 0
    %v249 = vperm.slane %v246, 1
    %v250 = vperm.slane %v246, 2
    %v257 = vunpack.c.l.b16 %v51
    %v258 = vunpack.c.h.b16 %v51
    %v259 = vunpack.c.l.b16 %v52
    %v260 = vunpack.c.h.b16 %v52
    %v261 = vunpack.c.l.b16 %v53
    %v262 = vunpack.c.h.b16 %v53
    %v263 = vpack.c.b16 %v257, %v257
    %v264 = vpack.c.b16 %v258, %v258
    %v265 = vpack.c.b16 %v259, %v259
    %v266 = vpack.c.b16 %v260, %v260
    %v267 = vpack.c.b16 %v261, %v261
    %v268 = vpack.c.b16 %v262, %v262
    %v467 = vunpack.c.l.b16 %v54
    %v468 = vunpack.c.h.b16 %v54
    %v469 = vunpack.c.l.b16 %v55
    %v470 = vunpack.c.l.b16 %v56
    %v471 = vunpack.c.h.b16 %v56
    %v472 = vunpack.c.l.b16 %v57
    %v473 = vunpack.c.l.b16 %v58
    %v474 = vunpack.c.h.b16 %v58
    %v475 = vunpack.c.l.b16 %v59
    %v476 = vunpack.c.l.b16 %v60
    %v477 = vunpack.c.h.b16 %v60
    %v478 = vunpack.c.l.b16 %v61
    %v479 = vunpack.c.l.b16 %v62
    %v480 = vunpack.c.h.b16 %v62
    %v481 = vunpack.c.l.b16 %v63
    %v482 = vunpack.c.l.b16 %v64
    %v483 = vunpack.c.h.b16 %v64
    %v484 = vunpack.c.l.b16 %v65
    %v485 = vunpack.c.l.b16 %v66
    %v486 = vunpack.c.h.b16 %v66
    %v487 = vunpack.c.l.b16 %v67
    %v488 = vunpack.c.l.b16 %v68
    %v489 = vunpack.c.h.b16 %v68
    %v490 = vunpack.c.l.b16 %v69
    %v491 = vunpack.c.l.b16 %v70
    %v492 = vunpack.c.h.b16 %v70
    %v493 = vunpack.c.l.b16 %v71
    %v494 = vunpack.c.l.b16 %v72
    %v495 = vunpack.c.h.b16 %v72
    %v496 = vunpack.c.l.b16 %v73
    %v497 = vunpack.c.l.b16 %v74
    %v498 = vunpack.c.h.b16 %v74
    %v499 = vunpack.c.l.b16 %v75
    %v500 = vunpack.c.l.b16 %v76
    %v501 = vunpack.c.h.b16 %v76
    %v502 = vunpack.c.l.b16 %v77
    %v503 = vunpack.c.l.b16 %v78
    %v504 = vunpack.c.h.b16 %v78
    %v505 = vunpack.c.l.b16 %v79
    %v506 = vunpack.c.l.b16 %v80
    %v507 = vunpack.c.h.b16 %v80
    %v508 = vunpack.c.l.b16 %v81
    %v509 = vunpack.c.l.b16 %v82
    %v510 = vunpack.c.h.b16 %v82
    %v511 = vunpack.c.l.b16 %v83
    %v512 = vunpack.c.l.b16 %v84
    %v513 = vunpack.c.h.b16 %v84
    %v514 = vunpack.c.l.b16 %v85
    %v515 = vunpack.c.l.b16 %v86
    %v516 = vunpack.c.h.b16 %v86
    %v517 = vunpack.c.l.b16 %v87
    %v518 = vunpack.c.l.b16 %v88
    %v519 = vunpack.c.h.b16 %v88
    %v520 = vunpack.c.l.b16 %v89
    %v521 = vunpack.c.l.b16 %v90
    %v522 = vunpack.c.h.b16 %v90
    %v523 = vunpack.c.l.b16 %v91
    %v524 = vunpack.c.l.b16 %v92
    %v525 = vunpack.c.h.b16 %v92
    %v526 = vunpack.c.l.b16 %v93
    %v527 = vunpack.c.l.b16 %v94
    %v528 = vunpack.c.h.b16 %v94
    %v529 = vunpack.c.l.b16 %v95
    %v530 = vunpack.c.l.b16 %v96
    %v531 = vunpack.c.h.b16 %v96
    %v532 = vunpack.c.l.b16 %v97
    %v533 = vunpack.c.l.b16 %v98
    %v534 = vunpack.c.h.b16 %v98
    %v535 = vunpack.c.l.b16 %v99
    %v536 = vunpack.c.l.b16 %v100
    %v537 = vunpack.c.h.b16 %v100
    %v538 = vunpack.c.l.b16 %v101
    %v539 = vunpack.c.l.b16 %v102
    %v540 = vunpack.c.h.b16 %v102
    %v541 = vunpack.c.l.b16 %v103
    %v542 = vunpack.c.l.b16 %v104
    %v543 = vunpack.c.h.b16 %v104
    %v544 = vunpack.c.l.b16 %v105
    %v545 = vunpack.c.l.b16 %v106
    %v546 = vunpack.c.h.b16 %v106
    %v547 = vunpack.c.l.b16 %v107
    %v548 = vunpack.c.l.b16 %v108
    %v549 = vunpack.c.h.b16 %v108
    %v550 = vunpack.c.l.b16 %v109
    %v551 = vunpack.c.l.b16 %v110
    %v552 = vunpack.c.h.b16 %v110
    %v553 = vunpack.c.l.b16 %v111
    %v554 = vunpack.c.l.b16 %v112
    %v555 = vunpack.c.h.b16 %v112
    %v556 = vunpack.c.l.b16 %v113
    %v557 = vunpack.c.l.b16 %v114
    %v558 = vunpack.c.h.b16 %v114
    %v559 = vunpack.c.l.b16 %v115
    %v560 = vunpack.c.l.b16 %v116
    %v561 = vunpack.c.h.b16 %v116
    %v562 = vunpack.c.l.b16 %v117
    %v563 = vunpack.c.l.b16 %v118
    %v564 = vunpack.c.h.b16 %v118
    %v565 = vunpack.c.l.b16 %v119
    %v566 = vunpack.c.l.b16 %v120
    %v567 = vunpack.c.h.b16 %v120
    %v568 = vunpack.c.l.b16 %v121
    %v569 = vunpack.c.l.b16 %v122
    %v570 = vunpack.c.h.b16 %v122
    %v571 = vunpack.c.l.b16 %v123
    %v572 = vunpack.c.l.b16 %v124
    %v573 = vunpack.c.h.b16 %v124
    %v574 = vunpack.c.l.b16 %v125
    %v575 = vunpack.c.l.b16 %v126
    %v576 = vunpack.c.h.b16 %v126
    %v577 = vunpack.c.l.b16 %v127
    %v578 = vunpack.c.l.b16 %v128
    %v579 = vunpack.c.h.b16 %v128
    %v580 = vunpack.c.l.b16 %v129
    %v581 = vunpack.c.l.b16 %v130
    %v582 = vunpack.c.h.b16 %v130
    %v583 = vunpack.c.l.b16 %v131
    %v584 = vunpack.c.l.b16 %v132
    %v585 = vunpack.c.h.b16 %v132
    %v586 = vunpack.c.l.b16 %v133
    %v587 = vunpack.c.l.b16 %v134
    %v588 = vunpack.c.h.b16 %v134
    %v589 = vunpack.c.l.b16 %v135
    %v590 = vunpack.c.l.b16 %v136
    %v591 = vunpack.c.h.b16 %v136
    %v592 = vunpack.c.l.b16 %v137
    %v593 = vunpack.c.l.b16 %v138
    %v594 = vunpack.c.h.b16 %v138
    %v595 = vunpack.c.l.b16 %v139
    %v596 = vunpack.c.l.b16 %v140
    %v597 = vunpack.c.h.b16 %v140
    %v598 = vunpack.c.l.b16 %v141
    %v599 = vunpack.c.l.b16 %v142
    %v600 = vunpack.c.h.b16 %v142
    %v601 = vunpack.c.l.b16 %v143
    %v602 = vunpack.c.l.b16 %v144
    %v603 = vunpack.c.h.b16 %v144
    %v604 = vunpack.c.l.b16 %v145
    %v605 = vunpack.c.l.b16 %v146
    %v606 = vunpack.c.h.b16 %v146
    %v607 = vunpack.c.l.b16 %v147
    %v608 = vunpack.c.l.b16 %v148
    %v609 = vunpack.c.h.b16 %v148
    %v610 = vunpack.c.l.b16 %v149
    %v611 = vunpack.c.l.b16 %v150
    %v612 = vunpack.c.h.b16 %v150
    %v613 = vunpack.c.l.b16 %v151
    %v614 = vunpack.c.l.b16 %v152
    %v615 = vunpack.c.h.b16 %v152
    %v616 = vunpack.c.l.b16 %v153
    %v617 = vunpack.c.l.b16 %v154
    %v618 = vunpack.c.h.b16 %v154
    %v619 = vunpack.c.l.b16 %v155
    %v620 = vunpack.c.l.b16 %v156
    %v621 = vunpack.c.h.b16 %v156
    %v622 = vunpack.c.l.b16 %v157
    %v623 = vunpack.c.l.b16 %v158
    %v624 = vunpack.c.h.b16 %v158
    %v625 = vunpack.c.l.b16 %v159
    %v626 = vunpack.c.l.b16 %v160
    %v627 = vunpack.c.h.b16 %v160
    %v628 = vunpack.c.l.b16 %v161
    %v629 = vunpack.c.l.b16 %v162
    %v630 = vunpack.c.h.b16 %v162
    %v631 = vunpack.c.l.b16 %v163
    %v632 = vunpack.c.l.b16 %v164
    %v633 = vunpack.c.h.b16 %v164
    %v634 = vunpack.c.l.b16 %v165
    %v635 = vunpack.c.l.b16 %v166
    %v636 = vunpack.c.h.b16 %v166
    %v637 = vunpack.c.l.b16 %v167
    %v638 = vunpack.c.l.b16 %v168
    %v639 = vunpack.c.h.b16 %v168
    %v640 = vunpack.c.l.b16 %v169
    %v641 = vunpack.c.l.b16 %v170
    %v642 = vunpack.c.h.b16 %v170
    %v643 = vunpack.c.l.b16 %v171
    %v644 = vunpack.c.l.b16 %v172
    %v645 = vunpack.c.h.b16 %v172
    %v646 = vunpack.c.l.b16 %v173
    %v647 = vunpack.c.l.b16 %v174
    %v648 = vunpack.c.h.b16 %v174
    %v649 = vunpack.c.l.b16 %v175
    %v650 = vunpack.c.l.b16 %v176
    %v651 = vunpack.c.h.b16 %v176
    %v652 = vunpack.c.l.b16 %v177
    %v653 = vunpack.c.l.b16 %v178
    %v654 = vunpack.c.h.b16 %v178
    %v655 = vunpack.c.l.b16 %v179
    %v656 = vunpack.c.l.b16 %v180
    %v657 = vunpack.c.h.b16 %v180
    %v658 = vunpack.c.l.b16 %v181
    %v659 = vunpack.c.l.b16 %v182
    %v660 = vunpack.c.h.b16 %v182
    %v661 = vunpack.c.l.b16 %v183
    %v662 = vunpack.c.l.b16 %v184
    %v663 = vunpack.c.h.b16 %v184
    %v664 = vunpack.c.l.b16 %v185
    %v665 = vunpack.c.l.b16 %v186
    %v666 = vunpack.c.h.b16 %v186
    %v667 = vunpack.c.l.b16 %v187
    %v668 = vunpack.c.l.b16 %v188
    %v669 = vunpack.c.h.b16 %v188
    %v670 = vunpack.c.l.b16 %v189
    %v671 = vunpack.c.l.b16 %v190
    %v672 = vunpack.c.h.b16 %v190
    %v673 = vunpack.c.l.b16 %v191
    %v674 = vunpack.c.l.b16 %v192
    %v675 = vunpack.c.h.b16 %v192
    %v676 = vunpack.c.l.b16 %v193
    %v677 = vunpack.c.l.b16 %v194
    %v678 = vunpack.c.h.b16 %v194
    %v679 = vunpack.c.l.b16 %v195
    %v680 = vunpack.c.l.b16 %v196
    %v681 = vunpack.c.h.b16 %v196
    %v682 = vunpack.c.l.b16 %v197
    %v683 = vunpack.c.l.b16 %v198
    %v684 = vunpack.c.h.b16 %v198
    %v685 = vunpack.c.l.b16 %v199
    %v686 = vunpack.c.l.b16 %v200
    %v687 = vunpack.c.h.b16 %v200
    %v688 = vunpack.c.l.b16 %v201
    %v689 = vunpack.c.l.b16 %v202
    %v690 = vunpack.c.h.b16 %v202
    %v691 = vunpack.c.l.b16 %v203
    %v692 = vunpack.c.l.b16 %v204
    %v693 = vunpack.c.h.b16 %v204
    %v694 = vunpack.c.l.b16 %v205
    %v695 = vunpack.c.l.b16 %v206
    %v696 = vunpack.c.h.b16 %v206
    %v697 = vunpack.c.l.b16 %v207
    %v698 = vunpack.c.l.b16 %v208
    %v699 = vunpack.c.h.b16 %v208
    %v700 = vunpack.c.l.b16 %v209
    %v701 = vunpack.c.l.b16 %v210
    %v702 = vunpack.c.h.b16 %v210
    %v703 = vunpack.c.l.b16 %v211
    %v704 = vunpack.c.l.b16 %v212
    %v705 = vunpack.c.h.b16 %v212
    %v706 = vunpack.c.l.b16 %v213
    %v707 = vunpack.c.l.b16 %v214
    %v708 = vunpack.c.h.b16 %v214
    %v709 = vunpack.c.l.b16 %v215
    %v710 = vunpack.c.l.b16 %v216
    %v711 = vunpack.c.h.b16 %v216
    %v712 = vunpack.c.l.b16 %v217
    %v713 = vunpack.c.l.b16 %v218
    %v714 = vunpack.c.h.b16 %v218
    %v715 = vunpack.c.l.b16 %v219
    %v716 = vunpack.c.l.b16 %v220
    %v717 = vunpack.c.h.b16 %v220
    %v718 = vunpack.c.l.b16 %v221
    %v719 = vunpack.c.l.b16 %v222
    %v720 = vunpack.c.h.b16 %v222
    %v721 = vunpack.c.l.b16 %v223
    %v722 = vunpack.c.l.b16 %v224
    %v723 = vunpack.c.h.b16 %v224
    %v724 = vunpack.c.l.b16 %v225
    %v725 = vunpack.c.l.b16 %v226
    %v726 = vunpack.c.h.b16 %v226
    %v727 = vunpack.c.l.b16 %v227
    %v728 = vunpack.c.l.b16 %v228
    %v729 = vunpack.c.h.b16 %v228
    %v730 = vunpack.c.l.b16 %v229
    %v731 = vunpack.c.l.b16 %v230
    %v732 = vunpack.c.h.b16 %v230
    %v733 = vunpack.c.l.b16 %v231
    %v734 = vunpack.c.l.b16 %v232
    %v735 = vunpack.c.h.b16 %v232
    %v736 = vunpack.c.l.b16 %v233
    %v737 = vunpack.c.l.b16 %v234
    %v738 = vunpack.c.h.b16 %v234
    %v739 = vunpack.c.l.b16 %v235
    %v740 = vunpack.c.l.b16 %v236
    %v741 = vunpack.c.h.b16 %v236
    %v742 = vunpack.c.l.b16 %v237
    %v743 = vunpack.c.l.b16 %v238
    %v744 = vunpack.c.h.b16 %v238
    %v745 = vunpack.c.l.b16 %v239
    %v746 = vunpack.c.l.b16 %v240
    %v747 = vunpack.c.h.b16 %v240
    %v748 = vunpack.c.l.b16 %v241
    %v749 = vunpack.c.l.b16 %v242
    %v750 = vunpack.c.h.b16 %v242
    %v751 = vunpack.c.l.b16 %v243
    %v752 = vunpack.c.l.b16 %v244
    %v753 = vunpack.c.h.b16 %v244
    %v754 = vunpack.c.l.b16 %v245
    %v755 = vpack.c.b16 %v470, %v467
    %v756 = vpack.c.b16 %v471, %v468
    %v757 = vpack.c.b16 %v472, %v469
    %v758 = vpack.c.b16 %v476, %v473
    %v759 = vpack.c.b16 %v477, %v474
    %v760 = vpack.c.b16 %v478, %v475
    %v761 = vpack.c.b16 %v482, %v479
    %v762 = vpack.c.b16 %v483, %v480
    %v763 = vpack.c.b16 %v484, %v481
    %v764 = vpack.c.b16 %v488, %v485
    %v765 = vpack.c.b16 %v489, %v486
    %v766 = vpack.c.b16 %v490, %v487
    %v767 = vpack.c.b16 %v494, %v491
    %v768 = vpack.c.b16 %v495, %v492
    %v769 = vpack.c.b16 %v496, %v493
    %v770 = vpack.c.b16 %v500, %v497
    %v771 = vpack.c.b16 %v501, %v498
    %v772 = vpack.c.b16 %v502, %v499
    %v773 = vpack.c.b16 %v506, %v503
    %v774 = vpack.c.b16 %v507, %v504
    %v775 = vpack.c.b16 %v508, %v505
    %v776 = vpack.c.b16 %v512, %v509
    %v777 = vpack.c.b16 %v513, %v510
    %v778 = vpack.c.b16 %v514, %v511
    %v779 = vpack.c.b16 %v518, %v515
    %v780 = vpack.c.b16 %v519, %v516
    %v781 = vpack.c.b16 %v520, %v517
    %v782 = vpack.c.b16 %v524, %v521
    %v783 = vpack.c.b16 %v525, %v522
    %v784 = vpack.c.b16 %v526, %v523
    %v785 = vpack.c.b16 %v530, %v527
    %v786 = vpack.c.b16 %v531, %v528
    %v787 = vpack.c.b16 %v532, %v529
    %v788 = vpack.c.b16 %v536, %v533
    %v789 = vpack.c.b16 %v537, %v534
    %v790 = vpack.c.b16 %v538, %v535
    %v791 = vpack.c.b16 %v542, %v539
    %v792 = vpack.c.b16 %v543, %v540
    %v793 = vpack.c.b16 %v544, %v541
    %v794 = vpack.c.b16 %v548, %v545
    %v795 = vpack.c.b16 %v549, %v546
    %v796 = vpack.c.b16 %v550, %v547
    %v797 = vpack.c.b16 %v554, %v551
    %v798 = vpack.c.b16 %v555, %v552
    %v799 = vpack.c.b16 %v556, %v553
    %v800 = vpack.c.b16 %v560, %v557
    %v801 = vpack.c.b16 %v561, %v558
    %v802 = vpack.c.b16 %v562, %v559
    %v803 = vpack.c.b16 %v566, %v563
    %v804 = vpack.c.b16 %v567, %v564
    %v805 = vpack.c.b16 %v568, %v565
    %v806 = vpack.c.b16 %v572, %v569
    %v807 = vpack.c.b16 %v573, %v570
    %v808 = vpack.c.b16 %v574, %v571
    %v809 = vpack.c.b16 %v578, %v575
    %v810 = vpack.c.b16 %v579, %v576
    %v811 = vpack.c.b16 %v580, %v577
    %v812 = vpack.c.b16 %v584, %v581
    %v813 = vpack.c.b16 %v585, %v582
    %v814 = vpack.c.b16 %v586, %v583
    %v815 = vpack.c.b16 %v590, %v587
    %v816 = vpack.c.b16 %v591, %v588
    %v817 = vpack.c.b16 %v592, %v589
    %v818 = vpack.c.b16 %v596, %v593
    %v819 = vpack.c.b16 %v597, %v594
    %v820 = vpack.c.b16 %v598, %v595
    %v821 = vpack.c.b16 %v602, %v599
    %v822 = vpack.c.b16 %v603, %v600
    %v823 = vpack.c.b16 %v604, %v601
    %v824 = vpack.c.b16 %v608, %v605
    %v825 = vpack.c.b16 %v609, %v606
    %v826 = vpack.c.b16 %v610, %v607
    %v827 = vpack.c.b16 %v614, %v611
    %v828 = vpack.c.b16 %v615, %v612
    %v829 = vpack.c.b16 %v616, %v613
    %v830 = vpack.c.b16 %v620, %v617
    %v831 = vpack.c.b16 %v621, %v618
    %v832 = vpack.c.b16 %v622, %v619
    %v833 = vpack.c.b16 %v626, %v623
    %v834 = vpack.c.b16 %v627, %v624
    %v835 = vpack.c.b16 %v628, %v625
    %v836 = vpack.c.b16 %v632, %v629
    %v837 = vpack.c.b16 %v633, %v630
    %v838 = vpack.c.b16 %v634, %v631
    %v839 = vpack.c.b16 %v638, %v635
    %v840 = vpack.c.b16 %v639, %v636
    %v841 = vpack.c.b16 %v640, %v637
    %v842 = vpack.c.b16 %v644, %v641
    %v843 = vpack.c.b16 %v645, %v642
    %v844 = vpack.c.b16 %v646, %v643
    %v845 = vpack.c.b16 %v650, %v647
    %v846 = vpack.c.b16 %v651, %v648
    %v847 = vpack.c.b16 %v652, %v649
    %v848 = vpack.c.b16 %v656, %v653
    %v849 = vpack.c.b16 %v657, %v654
    %v850 = vpack.c.b16 %v658, %v655
    %v851 = vpack.c.b16 %v662, %v659
    %v852 = vpack.c.b16 %v663, %v660
    %v853 = vpack.c.b16 %v664, %v661
    %v854 = vpack.c.b16 %v668, %v665
    %v855 = vpack.c.b16 %v669, %v666
    %v856 = vpack.c.b16 %v670, %v667
    %v857 = vpack.c.b16 %v674, %v671
    %v858 = vpack.c.b16 %v675, %v672
    %v859 = vpack.c.b16 %v676, %v673
    %v860 = vpack.c.b16 %v680, %v677
    %v861 = vpack.c.b16 %v681, %v678
    %v862 = vpack.c.b16 %v682, %v679
    %v863 = vpack.c.b16 %v686, %v683
    %v864 = vpack.c.b16 %v687, %v684
    %v865 = vpack.c.b16 %v688, %v685
    %v866 = vpack.c.b16 %v692, %v689
    %v867 = vpack.c.b16 %v693, %v690
    %v868 = vpack.c.b16 %v694, %v691
    %v869 = vpack.c.b16 %v698, %v695
    %v870 = vpack.c.b16 %v699, %v696
    %v871 = vpack.c.b16 %v700, %v697
    %v872 = vpack.c.b16 %v704, %v701
    %v873 = vpack.c.b16 %v705, %v702
    %v874 = vpack.c.b16 %v706, %v703
    %v875 = vpack.c.b16 %v710, %v707
    %v876 = vpack.c.b16 %v711, %v708
    %v877 = vpack.c.b16 %v712, %v709
    %v878 = vpack.c.b16 %v716, %v713
    %v879 = vpack.c.b16 %v717, %v714
    %v880 = vpack.c.b16 %v718, %v715
    %v881 = vpack.c.b16 %v722, %v719
    %v882 = vpack.c.b16 %v723, %v720
    %v883 = vpack.c.b16 %v724, %v721
    %v884 = vpack.c.b16 %v728, %v725
    %v885 = vpack.c.b16 %v729, %v726
    %v886 = vpack.c.b16 %v730, %v727
    %v887 = vpack.c.b16 %v734, %v731
    %v888 = vpack.c.b16 %v735, %v732
    %v889 = vpack.c.b16 %v736, %v733
    %v890 = vpack.c.b16 %v740, %v737
    %v891 = vpack.c.b16 %v741, %v738
    %v892 = vpack.c.b16 %v742, %v739
    %v893 = vpack.c.b16 %v746, %v743
    %v894 = vpack.c.b16 %v747, %v744
    %v895 = vpack.c.b16 %v748, %v745
    %v896 = vpack.c.b16 %v752, %v749
    %v897 = vpack.c.b16 %v753, %v750
    %v898 = vpack.c.b16 %v754, %v751
    %1043 = vmatpush.bf16.msra.mxu0 %v776
    %1044 = vmatpush.bf16.msra.mxu0 %v773
    %1045 = vmatpush.bf16.msra.mxu0 %v770
    %1046 = vmatpush.bf16.msra.mxu0 %v767
    %1047 = vmatpush.bf16.msra.mxu0 %v764
    %1048 = vmatpush.bf16.msra.mxu0 %v761
    %1049 = vmatpush.bf16.msra.mxu0 %v758
    %1050 = vmatpush.bf16.msra.mxu0 %v755
    %1051 = vmatmul.bf16.gmra.mxu0 %v263
    %v1052 = vpop.f32.mrf.mxu0
    %v1053 = vadd.f32 %v248, %v1052
    %v1054 = vpop.f32.mrf.mxu0
    %1055 = vdwg.mxu0
    %1056 = vmatpush.bf16.msra.mxu0 %v800
    %1057 = vmatpush.bf16.msra.mxu0 %v797
    %1058 = vmatpush.bf16.msra.mxu0 %v794
    %1059 = vmatpush.bf16.msra.mxu0 %v791
    %1060 = vmatpush.bf16.msra.mxu0 %v788
    %1061 = vmatpush.bf16.msra.mxu0 %v785
    %1062 = vmatpush.bf16.msra.mxu0 %v782
    %1063 = vmatpush.bf16.msra.mxu0 %v779
    %1064 = vmatmul.bf16.gmra.mxu0 %v264
    %v1065 = vpop.f32.mrf.mxu0
    %v1066 = vadd.f32 %v1053, %v1065
    %v1067 = vpop.f32.mrf.mxu0
    %1068 = vdwg.mxu0
    %1069 = vmatpush.bf16.msra.mxu0 %v824
    %1070 = vmatpush.bf16.msra.mxu0 %v821
    %1071 = vmatpush.bf16.msra.mxu0 %v818
    %1072 = vmatpush.bf16.msra.mxu0 %v815
    %1073 = vmatpush.bf16.msra.mxu0 %v812
    %1074 = vmatpush.bf16.msra.mxu0 %v809
    %1075 = vmatpush.bf16.msra.mxu0 %v806
    %1076 = vmatpush.bf16.msra.mxu0 %v803
    %1077 = vmatmul.bf16.gmra.mxu0 %v265
    %v1078 = vpop.f32.mrf.mxu0
    %v1079 = vadd.f32 %v1066, %v1078
    %v1080 = vpop.f32.mrf.mxu0
    %1081 = vdwg.mxu0
    %1082 = vmatpush.bf16.msra.mxu0 %v848
    %1083 = vmatpush.bf16.msra.mxu0 %v845
    %1084 = vmatpush.bf16.msra.mxu0 %v842
    %1085 = vmatpush.bf16.msra.mxu0 %v839
    %1086 = vmatpush.bf16.msra.mxu0 %v836
    %1087 = vmatpush.bf16.msra.mxu0 %v833
    %1088 = vmatpush.bf16.msra.mxu0 %v830
    %1089 = vmatpush.bf16.msra.mxu0 %v827
    %1090 = vmatmul.bf16.gmra.mxu0 %v266
    %v1091 = vpop.f32.mrf.mxu0
    %v1092 = vadd.f32 %v1079, %v1091
    %v1093 = vpop.f32.mrf.mxu0
    %1094 = vdwg.mxu0
    %1095 = vmatpush.bf16.msra.mxu0 %v872
    %1096 = vmatpush.bf16.msra.mxu0 %v869
    %1097 = vmatpush.bf16.msra.mxu0 %v866
    %1098 = vmatpush.bf16.msra.mxu0 %v863
    %1099 = vmatpush.bf16.msra.mxu0 %v860
    %1100 = vmatpush.bf16.msra.mxu0 %v857
    %1101 = vmatpush.bf16.msra.mxu0 %v854
    %1102 = vmatpush.bf16.msra.mxu0 %v851
    %1103 = vmatmul.bf16.gmra.mxu0 %v267
    %v1104 = vpop.f32.mrf.mxu0
    %v1105 = vadd.f32 %v1092, %v1104
    %v1106 = vpop.f32.mrf.mxu0
    %1107 = vdwg.mxu0
    %1108 = vmatpush.bf16.msra.mxu0 %v896
    %1109 = vmatpush.bf16.msra.mxu0 %v893
    %1110 = vmatpush.bf16.msra.mxu0 %v890
    %1111 = vmatpush.bf16.msra.mxu0 %v887
    %1112 = vmatpush.bf16.msra.mxu0 %v884
    %1113 = vmatpush.bf16.msra.mxu0 %v881
    %1114 = vmatpush.bf16.msra.mxu0 %v878
    %1115 = vmatpush.bf16.msra.mxu0 %v875
    %1116 = vmatmul.bf16.gmra.mxu0 %v268
    %v1117 = vpop.f32.mrf.mxu0
    %v1118 = vadd.f32 %v1105, %v1117
    %v1119 = vpop.f32.mrf.mxu0
    %1120 = vdwg.mxu0
    %1121 = vmatpush.bf16.msra.mxu0 %v777
    %1122 = vmatpush.bf16.msra.mxu0 %v774
    %1123 = vmatpush.bf16.msra.mxu0 %v771
    %1124 = vmatpush.bf16.msra.mxu0 %v768
    %1125 = vmatpush.bf16.msra.mxu0 %v765
    %1126 = vmatpush.bf16.msra.mxu0 %v762
    %1127 = vmatpush.bf16.msra.mxu0 %v759
    %1128 = vmatpush.bf16.msra.mxu0 %v756
    %1129 = vmatmul.bf16.gmra.mxu0 %v263
    %v1130 = vpop.f32.mrf.mxu0
    %v1131 = vadd.f32 %v249, %v1130
    %v1132 = vpop.f32.mrf.mxu0
    %1133 = vdwg.mxu0
    %1134 = vmatpush.bf16.msra.mxu0 %v801
    %1135 = vmatpush.bf16.msra.mxu0 %v798
    %1136 = vmatpush.bf16.msra.mxu0 %v795
    %1137 = vmatpush.bf16.msra.mxu0 %v792
    %1138 = vmatpush.bf16.msra.mxu0 %v789
    %1139 = vmatpush.bf16.msra.mxu0 %v786
    %1140 = vmatpush.bf16.msra.mxu0 %v783
    %1141 = vmatpush.bf16.msra.mxu0 %v780
    %1142 = vmatmul.bf16.gmra.mxu0 %v264
    %v1143 = vpop.f32.mrf.mxu0
    %v1144 = vadd.f32 %v1131, %v1143
    %v1145 = vpop.f32.mrf.mxu0
    %1146 = vdwg.mxu0
    %1147 = vmatpush.bf16.msra.mxu0 %v825
    %1148 = vmatpush.bf16.msra.mxu0 %v822
    %1149 = vmatpush.bf16.msra.mxu0 %v819
    %1150 = vmatpush.bf16.msra.mxu0 %v816
    %1151 = vmatpush.bf16.msra.mxu0 %v813
    %1152 = vmatpush.bf16.msra.mxu0 %v810
    %1153 = vmatpush.bf16.msra.mxu0 %v807
    %1154 = vmatpush.bf16.msra.mxu0 %v804
    %1155 = vmatmul.bf16.gmra.mxu0 %v265
    %v1156 = vpop.f32.mrf.mxu0
    %v1157 = vadd.f32 %v1144, %v1156
    %v1158 = vpop.f32.mrf.mxu0
    %1159 = vdwg.mxu0
    %1160 = vmatpush.bf16.msra.mxu0 %v849
    %1161 = vmatpush.bf16.msra.mxu0 %v846
    %1162 = vmatpush.bf16.msra.mxu0 %v843
    %1163 = vmatpush.bf16.msra.mxu0 %v840
    %1164 = vmatpush.bf16.msra.mxu0 %v837
    %1165 = vmatpush.bf16.msra.mxu0 %v834
    %1166 = vmatpush.bf16.msra.mxu0 %v831
    %1167 = vmatpush.bf16.msra.mxu0 %v828
    %1168 = vmatmul.bf16.gmra.mxu0 %v266
    %v1169 = vpop.f32.mrf.mxu0
    %v1170 = vadd.f32 %v1157, %v1169
    %v1171 = vpop.f32.mrf.mxu0
    %1172 = vdwg.mxu0
    %1173 = vmatpush.bf16.msra.mxu0 %v873
    %1174 = vmatpush.bf16.msra.mxu0 %v870
    %1175 = vmatpush.bf16.msra.mxu0 %v867
    %1176 = vmatpush.bf16.msra.mxu0 %v864
    %1177 = vmatpush.bf16.msra.mxu0 %v861
    %1178 = vmatpush.bf16.msra.mxu0 %v858
    %1179 = vmatpush.bf16.msra.mxu0 %v855
    %1180 = vmatpush.bf16.msra.mxu0 %v852
    %1181 = vmatmul.bf16.gmra.mxu0 %v267
    %v1182 = vpop.f32.mrf.mxu0
    %v1183 = vadd.f32 %v1170, %v1182
    %v1184 = vpop.f32.mrf.mxu0
    %1185 = vdwg.mxu0
    %1186 = vmatpush.bf16.msra.mxu0 %v897
    %1187 = vmatpush.bf16.msra.mxu0 %v894
    %1188 = vmatpush.bf16.msra.mxu0 %v891
    %1189 = vmatpush.bf16.msra.mxu0 %v888
    %1190 = vmatpush.bf16.msra.mxu0 %v885
    %1191 = vmatpush.bf16.msra.mxu0 %v882
    %1192 = vmatpush.bf16.msra.mxu0 %v879
    %1193 = vmatpush.bf16.msra.mxu0 %v876
    %1194 = vmatmul.bf16.gmra.mxu0 %v268
    %v1195 = vpop.f32.mrf.mxu0
    %v1196 = vadd.f32 %v1183, %v1195
    %v1197 = vpop.f32.mrf.mxu0
    %1198 = vdwg.mxu0
    %1199 = vmatpush.bf16.msra.mxu0 %v778
    %1200 = vmatpush.bf16.msra.mxu0 %v775
    %1201 = vmatpush.bf16.msra.mxu0 %v772
    %1202 = vmatpush.bf16.msra.mxu0 %v769
    %1203 = vmatpush.bf16.msra.mxu0 %v766
    %1204 = vmatpush.bf16.msra.mxu0 %v763
    %1205 = vmatpush.bf16.msra.mxu0 %v760
    %1206 = vmatpush.bf16.msra.mxu0 %v757
    %1207 = vmatmul.bf16.gmra.mxu0 %v263
    %v1208 = vpop.f32.mrf.mxu0
    %v1209 = vadd.f32 %v250, %v1208
    %v1210 = vpop.f32.mrf.mxu0
    %1211 = vdwg.mxu0
    %1212 = vmatpush.bf16.msra.mxu0 %v802
    %1213 = vmatpush.bf16.msra.mxu0 %v799
    %1214 = vmatpush.bf16.msra.mxu0 %v796
    %1215 = vmatpush.bf16.msra.mxu0 %v793
    %1216 = vmatpush.bf16.msra.mxu0 %v790
    %1217 = vmatpush.bf16.msra.mxu0 %v787
    %1218 = vmatpush.bf16.msra.mxu0 %v784
    %1219 = vmatpush.bf16.msra.mxu0 %v781
    %1220 = vmatmul.bf16.gmra.mxu0 %v264
    %v1221 = vpop.f32.mrf.mxu0
    %v1222 = vadd.f32 %v1209, %v1221
    %v1223 = vpop.f32.mrf.mxu0
    %1224 = vdwg.mxu0
    %1225 = vmatpush.bf16.msra.mxu0 %v826
    %1226 = vmatpush.bf16.msra.mxu0 %v823
    %1227 = vmatpush.bf16.msra.mxu0 %v820
    %1228 = vmatpush.bf16.msra.mxu0 %v817
    %1229 = vmatpush.bf16.msra.mxu0 %v814
    %1230 = vmatpush.bf16.msra.mxu0 %v811
    %1231 = vmatpush.bf16.msra.mxu0 %v808
    %1232 = vmatpush.bf16.msra.mxu0 %v805
    %1233 = vmatmul.bf16.gmra.mxu0 %v265
    %v1234 = vpop.f32.mrf.mxu0
    %v1235 = vadd.f32 %v1222, %v1234
    %v1236 = vpop.f32.mrf.mxu0
    %1237 = vdwg.mxu0
    %1238 = vmatpush.bf16.msra.mxu0 %v850
    %1239 = vmatpush.bf16.msra.mxu0 %v847
    %1240 = vmatpush.bf16.msra.mxu0 %v844
    %1241 = vmatpush.bf16.msra.mxu0 %v841
    %1242 = vmatpush.bf16.msra.mxu0 %v838
    %1243 = vmatpush.bf16.msra.mxu0 %v835
    %1244 = vmatpush.bf16.msra.mxu0 %v832
    %1245 = vmatpush.bf16.msra.mxu0 %v829
    %1246 = vmatmul.bf16.gmra.mxu0 %v266
    %v1247 = vpop.f32.mrf.mxu0
    %v1248 = vadd.f32 %v1235, %v1247
    %v1249 = vpop.f32.mrf.mxu0
    %1250 = vdwg.mxu0
    %1251 = vmatpush.bf16.msra.mxu0 %v874
    %1252 = vmatpush.bf16.msra.mxu0 %v871
    %1253 = vmatpush.bf16.msra.mxu0 %v868
    %1254 = vmatpush.bf16.msra.mxu0 %v865
    %1255 = vmatpush.bf16.msra.mxu0 %v862
    %1256 = vmatpush.bf16.msra.mxu0 %v859
    %1257 = vmatpush.bf16.msra.mxu0 %v856
    %1258 = vmatpush.bf16.msra.mxu0 %v853
    %1259 = vmatmul.bf16.gmra.mxu0 %v267
    %v1260 = vpop.f32.mrf.mxu0
    %v1261 = vadd.f32 %v1248, %v1260
    %v1262 = vpop.f32.mrf.mxu0
    %1263 = vdwg.mxu0
    %1264 = vmatpush.bf16.msra.mxu0 %v898
    %1265 = vmatpush.bf16.msra.mxu0 %v895
    %1266 = vmatpush.bf16.msra.mxu0 %v892
    %1267 = vmatpush.bf16.msra.mxu0 %v889
    %1268 = vmatpush.bf16.msra.mxu0 %v886
    %1269 = vmatpush.bf16.msra.mxu0 %v883
    %1270 = vmatpush.bf16.msra.mxu0 %v880
    %1271 = vmatpush.bf16.msra.mxu0 %v877
    %1272 = vmatmul.bf16.gmra.mxu0 %v268
    %v1273 = vpop.f32.mrf.mxu0
    %v1274 = vadd.f32 %v1261, %v1273
    %v1275 = vpop.f32.mrf.mxu0
    %1276 = vdwg.mxu0
    %v1277 = vrot.slane %v1118, 4
    %v1278 = vadd.f32 %v1118, %v1277
    %v1279 = vrot.slane %v1278, 2
    %v1280 = vadd.f32 %v1278, %v1279
    %v1281 = vrot.slane %v1280, 1
    %v1282 = vadd.f32 %v1280, %v1281
    %v1283 = vrot.slane %v1196, 4
    %v1284 = vadd.f32 %v1196, %v1283
    %v1285 = vrot.slane %v1284, 2
    %v1286 = vadd.f32 %v1284, %v1285
    %v1287 = vrot.slane %v1286, 1
    %v1288 = vadd.f32 %v1286, %v1287
    %v1289 = vrot.slane %v1274, 4
    %v1290 = vadd.f32 %v1274, %v1289
    %v1291 = vrot.slane %v1290, 2
    %v1292 = vadd.f32 %v1290, %v1291
    %v1293 = vrot.slane %v1292, 1
    %v1294 = vadd.f32 %v1292, %v1293
    %v1295 = vld [vmem:[%s3] sm:$0x7]
    %v1297 = vperm.slane %v1295, 0
    %v1298 = vperm.slane %v1295, 1
    %v1299 = vperm.slane %v1295, 2
    %v1303 = vmul.f32 %v1282, %v1297
    %v1304 = vmul.f32 %v1288, %v1298
    %v1305 = vmul.f32 %v1294, %v1299
    %vm1306 = vcmask 1040384
    %v1307 = vsel %vm1306, %v1303, 0.0
    %v1308 = vsel %vm1306, %v1304, 0.0
    %v1309 = vadd.f32 %v1307, %v1308
    %v1310 = vsel %vm1306, %v1305, 0.0
    %v1311 = vadd.f32 %v1309, %v1310
    %1312 = vadd.xlane.f32.xlu0 %v1311
    %v1313 = vpop.xlane.xlu0 %1312
    %v1314 = vmul.f32 %v1313, 0.00390625
    %v1315 = vxor.u32 %v1314, 2147483648
    %v1316 = vmul.f32 %v1315, 1.442695
    %v1317 = vpow.pop %v1316
    %v1318 = vadd.f32 %v1317, 1.0
    %v1319 = vrcp.pop %v1318
    %v1320 = vmul.f32 %v1318, %v1319
    %v1321 = vsub.f32 1.0, %v1320
    %v1322 = vmul.f32 %v1319, %v1321
    %v1323 = vadd.f32 %v1319, %v1322
    %vm1324 = vweird.f32 %v1318
    %vm1325 = vweird.f32 %v1319
    %vm1326 = vmor %vm1324, %vm1325
    %v1327 = vsel %vm1326, %v1319, %v1323
    %v1328 = vand.u32 2147483647, %v1318
    %vm1329 = vcmp.eq.f32.partialorder %v1328, 8.507059e+37
    %v1330 = vand.u32 %v1318, 2147483648
    %v1331 = vor.u32 1.1754944e-38, %v1330
    %v1332 = vsel %vm1329, %v1331, %v1327
    %v1333 = vmul.f32 1.0, %v1332
    %v1334 = vmul.f32 %v1314, %v1333
    %v1335 = vld [vmem:[%s4] sm:$0x7]
    %v1337 = vperm.slane %v1335, 0
    %v1338 = vperm.slane %v1335, 1
    %v1339 = vperm.slane %v1335, 2
    %v1343 = vmul.f32 %v1334, %v1337
    %v1344 = vmul.f32 %v1334, %v1338
    %v1345 = vmul.f32 %v1334, %v1339
    %v1346 = vxor.u32 %v1343, 2147483648
    %v1347 = vxor.u32 %v1344, 2147483648
    %v1348 = vxor.u32 %v1345, 2147483648
    %v1349 = vmul.f32 %v1346, 1.442695
    %v1350 = vpow.pop %v1349
    %v1351 = vmul.f32 %v1347, 1.442695
    %v1352 = vpow.pop %v1351
    %v1353 = vmul.f32 %v1348, 1.442695
    %v1354 = vpow.pop %v1353
    %v1355 = vadd.f32 %v1350, 1.0
    %v1356 = vadd.f32 %v1352, 1.0
    %v1357 = vadd.f32 %v1354, 1.0
    %v1358 = vrcp.pop %v1355
    %v1359 = vmul.f32 %v1355, %v1358
    %v1360 = vsub.f32 1.0, %v1359
    %v1361 = vmul.f32 %v1358, %v1360
    %v1362 = vadd.f32 %v1358, %v1361
    %vm1363 = vweird.f32 %v1355
    %vm1364 = vweird.f32 %v1358
    %vm1365 = vmor %vm1363, %vm1364
    %v1366 = vsel %vm1365, %v1358, %v1362
    %v1367 = vand.u32 2147483647, %v1355
    %vm1368 = vcmp.eq.f32.partialorder %v1367, 8.507059e+37
    %v1369 = vand.u32 %v1355, 2147483648
    %v1370 = vor.u32 1.1754944e-38, %v1369
    %v1371 = vsel %vm1368, %v1370, %v1366
    %v1372 = vmul.f32 1.0, %v1371
    %v1373 = vrcp.pop %v1356
    %v1374 = vmul.f32 %v1356, %v1373
    %v1375 = vsub.f32 1.0, %v1374
    %v1376 = vmul.f32 %v1373, %v1375
    %v1377 = vadd.f32 %v1373, %v1376
    %vm1378 = vweird.f32 %v1356
    %vm1379 = vweird.f32 %v1373
    %vm1380 = vmor %vm1378, %vm1379
    %v1381 = vsel %vm1380, %v1373, %v1377
    %v1382 = vand.u32 2147483647, %v1356
    %vm1383 = vcmp.eq.f32.partialorder %v1382, 8.507059e+37
    %v1384 = vand.u32 %v1356, 2147483648
    %v1385 = vor.u32 1.1754944e-38, %v1384
    %v1386 = vsel %vm1383, %v1385, %v1381
    %v1387 = vmul.f32 1.0, %v1386
    %v1388 = vrcp.pop %v1357
    %v1389 = vmul.f32 %v1357, %v1388
    %v1390 = vsub.f32 1.0, %v1389
    %v1391 = vmul.f32 %v1388, %v1390
    %v1392 = vadd.f32 %v1388, %v1391
    %vm1393 = vweird.f32 %v1357
    %vm1394 = vweird.f32 %v1388
    %vm1395 = vmor %vm1393, %vm1394
    %v1396 = vsel %vm1395, %v1388, %v1392
    %v1397 = vand.u32 2147483647, %v1357
    %vm1398 = vcmp.eq.f32.partialorder %v1397, 8.507059e+37
    %v1399 = vand.u32 %v1357, 2147483648
    %v1400 = vor.u32 1.1754944e-38, %v1399
    %v1401 = vsel %vm1398, %v1400, %v1396
    %v1402 = vmul.f32 1.0, %v1401
    %v1403 = vperm.slane %v1372, 0
    %v1404 = vperm.slane %v1387, 0
    %v1405 = vperm.slane %v1402, 0
    %v1406 = vmul.f32 %v1118, %v1403
    %v1407 = vmul.f32 %v1196, %v1404
    %v1408 = vmul.f32 %v1274, %v1405
    %v1409 = vpack.c.bf16 %v1406, %v1406
    %v1410 = vpack.c.bf16 %v1407, %v1407
    %v1411 = vpack.c.bf16 %v1408, %v1408
    %v1412 = vld [vmem:[%s5] sm:$0xf]
    %v1413 = vld [vmem:[%s5 + $0x4] sm:$0xf]
    %v1414 = vld [vmem:[%s5 + $0x8] sm:$0xf]
    %v1415 = vld [vmem:[%s5 + $0xc] sm:$0xf]
    %v1416 = vld [vmem:[%s5 + $0x10] sm:$0xf]
    %v1417 = vld [vmem:[%s5 + $0x14] sm:$0xf]
    %v1418 = vld [vmem:[%s5 + $0x18] sm:$0xf]
    %v1419 = vld [vmem:[%s5 + $0x1c] sm:$0xf]
    %v1420 = vld [vmem:[%s5 + $0x20] sm:$0xf]
    %v1421 = vld [vmem:[%s5 + $0x24] sm:$0xf]
    %v1422 = vld [vmem:[%s5 + $0x28] sm:$0xf]
    %v1423 = vld [vmem:[%s5 + $0x2c] sm:$0xf]
    %v1424 = vld [vmem:[%s5 + $0x30] sm:$0xf]
    %v1425 = vld [vmem:[%s5 + $0x34] sm:$0xf]
    %v1426 = vld [vmem:[%s5 + $0x38] sm:$0xf]
    %v1427 = vld [vmem:[%s5 + $0x3c] sm:$0xf]
    %v1428 = vld [vmem:[%s5 + $0x40] sm:$0xf]
    %v1429 = vld [vmem:[%s5 + $0x44] sm:$0xf]
    %v1430 = vld [vmem:[%s5 + $0x48] sm:$0xf]
    %v1431 = vld [vmem:[%s5 + $0x4c] sm:$0xf]
    %v1432 = vld [vmem:[%s5 + $0x50] sm:$0xf]
    %v1433 = vld [vmem:[%s5 + $0x54] sm:$0xf]
    %v1434 = vld [vmem:[%s5 + $0x58] sm:$0xf]
    %v1435 = vld [vmem:[%s5 + $0x5c] sm:$0xf]
    %v1436 = vld [vmem:[%s5 + $0x60] sm:$0xf]
    %v1437 = vld [vmem:[%s5 + $0x64] sm:$0xf]
    %v1438 = vld [vmem:[%s5 + $0x68] sm:$0xf]
    %v1439 = vld [vmem:[%s5 + $0x6c] sm:$0xf]
    %v1440 = vld [vmem:[%s5 + $0x70] sm:$0xf]
    %v1441 = vld [vmem:[%s5 + $0x74] sm:$0xf]
    %v1442 = vld [vmem:[%s5 + $0x78] sm:$0xf]
    %v1443 = vld [vmem:[%s5 + $0x7c] sm:$0xf]
    %v1444 = vld [vmem:[%s5 + $0x80] sm:$0xf]
    %v1445 = vld [vmem:[%s5 + $0x84] sm:$0xf]
    %v1446 = vld [vmem:[%s5 + $0x88] sm:$0xf]
    %v1447 = vld [vmem:[%s5 + $0x8c] sm:$0xf]
    %v1448 = vld [vmem:[%s5 + $0x90] sm:$0xf]
    %v1449 = vld [vmem:[%s5 + $0x94] sm:$0xf]
    %v1450 = vld [vmem:[%s5 + $0x98] sm:$0xf]
    %v1451 = vld [vmem:[%s5 + $0x9c] sm:$0xf]
    %v1452 = vld [vmem:[%s5 + $0xa0] sm:$0xf]
    %v1453 = vld [vmem:[%s5 + $0xa4] sm:$0xf]
    %v1454 = vld [vmem:[%s5 + $0xa8] sm:$0xf]
    %v1455 = vld [vmem:[%s5 + $0xac] sm:$0xf]
    %v1456 = vld [vmem:[%s5 + $0xb0] sm:$0xf]
    %v1457 = vld [vmem:[%s5 + $0xb4] sm:$0xf]
    %v1458 = vld [vmem:[%s5 + $0xb8] sm:$0xf]
    %v1459 = vld [vmem:[%s5 + $0xbc] sm:$0xf]
    %v1460 = vld [vmem:[%s6] sm:$0x1]
    %v1462 = vperm.slane %v1460, 0
    %v1512 = vunpack.c.l.b16 %v1412
    %v1513 = vunpack.c.l.b16 %v1413
    %v1514 = vunpack.c.l.b16 %v1414
    %v1515 = vunpack.c.l.b16 %v1415
    %v1516 = vunpack.c.l.b16 %v1416
    %v1517 = vunpack.c.l.b16 %v1417
    %v1518 = vunpack.c.l.b16 %v1418
    %v1519 = vunpack.c.l.b16 %v1419
    %v1520 = vunpack.c.l.b16 %v1420
    %v1521 = vunpack.c.l.b16 %v1421
    %v1522 = vunpack.c.l.b16 %v1422
    %v1523 = vunpack.c.l.b16 %v1423
    %v1524 = vunpack.c.l.b16 %v1424
    %v1525 = vunpack.c.l.b16 %v1425
    %v1526 = vunpack.c.l.b16 %v1426
    %v1527 = vunpack.c.l.b16 %v1427
    %v1528 = vunpack.c.l.b16 %v1428
    %v1529 = vunpack.c.l.b16 %v1429
    %v1530 = vunpack.c.l.b16 %v1430
    %v1531 = vunpack.c.l.b16 %v1431
    %v1532 = vunpack.c.l.b16 %v1432
    %v1533 = vunpack.c.l.b16 %v1433
    %v1534 = vunpack.c.l.b16 %v1434
    %v1535 = vunpack.c.l.b16 %v1435
    %v1536 = vunpack.c.l.b16 %v1436
    %v1537 = vunpack.c.l.b16 %v1437
    %v1538 = vunpack.c.l.b16 %v1438
    %v1539 = vunpack.c.l.b16 %v1439
    %v1540 = vunpack.c.l.b16 %v1440
    %v1541 = vunpack.c.l.b16 %v1441
    %v1542 = vunpack.c.l.b16 %v1442
    %v1543 = vunpack.c.l.b16 %v1443
    %v1544 = vunpack.c.l.b16 %v1444
    %v1545 = vunpack.c.l.b16 %v1445
    %v1546 = vunpack.c.l.b16 %v1446
    %v1547 = vunpack.c.l.b16 %v1447
    %v1548 = vunpack.c.l.b16 %v1448
    %v1549 = vunpack.c.l.b16 %v1449
    %v1550 = vunpack.c.l.b16 %v1450
    %v1551 = vunpack.c.l.b16 %v1451
    %v1552 = vunpack.c.l.b16 %v1452
    %v1553 = vunpack.c.l.b16 %v1453
    %v1554 = vunpack.c.l.b16 %v1454
    %v1555 = vunpack.c.l.b16 %v1455
    %v1556 = vunpack.c.l.b16 %v1456
    %v1557 = vunpack.c.l.b16 %v1457
    %v1558 = vunpack.c.l.b16 %v1458
    %v1559 = vunpack.c.l.b16 %v1459
    %v1560 = vpack.c.b16 %v1513, %v1512
    %v1561 = vpack.c.b16 %v1515, %v1514
    %v1562 = vpack.c.b16 %v1517, %v1516
    %v1563 = vpack.c.b16 %v1519, %v1518
    %v1564 = vpack.c.b16 %v1521, %v1520
    %v1565 = vpack.c.b16 %v1523, %v1522
    %v1566 = vpack.c.b16 %v1525, %v1524
    %v1567 = vpack.c.b16 %v1527, %v1526
    %v1568 = vpack.c.b16 %v1529, %v1528
    %v1569 = vpack.c.b16 %v1531, %v1530
    %v1570 = vpack.c.b16 %v1533, %v1532
    %v1571 = vpack.c.b16 %v1535, %v1534
    %v1572 = vpack.c.b16 %v1537, %v1536
    %v1573 = vpack.c.b16 %v1539, %v1538
    %v1574 = vpack.c.b16 %v1541, %v1540
    %v1575 = vpack.c.b16 %v1543, %v1542
    %v1576 = vpack.c.b16 %v1545, %v1544
    %v1577 = vpack.c.b16 %v1547, %v1546
    %v1578 = vpack.c.b16 %v1549, %v1548
    %v1579 = vpack.c.b16 %v1551, %v1550
    %v1580 = vpack.c.b16 %v1553, %v1552
    %v1581 = vpack.c.b16 %v1555, %v1554
    %v1582 = vpack.c.b16 %v1557, %v1556
    %v1583 = vpack.c.b16 %v1559, %v1558
    %1608 = vmatpush.bf16.msra.mxu0 %v1567
    %1609 = vmatpush.bf16.msra.mxu0 %v1566
    %1610 = vmatpush.bf16.msra.mxu0 %v1565
    %1611 = vmatpush.bf16.msra.mxu0 %v1564
    %1612 = vmatpush.bf16.msra.mxu0 %v1563
    %1613 = vmatpush.bf16.msra.mxu0 %v1562
    %1614 = vmatpush.bf16.msra.mxu0 %v1561
    %1615 = vmatpush.bf16.msra.mxu0 %v1560
    %1616 = vmatmul.bf16.gmra.mxu0 %v1409
    %v1617 = vpop.f32.mrf.mxu0
    %v1618 = vadd.f32 %v1462, %v1617
    %v1619 = vpop.f32.mrf.mxu0
    %1620 = vdwg.mxu0
    %1621 = vmatpush.bf16.msra.mxu0 %v1575
    %1622 = vmatpush.bf16.msra.mxu0 %v1574
    %1623 = vmatpush.bf16.msra.mxu0 %v1573
    %1624 = vmatpush.bf16.msra.mxu0 %v1572
    %1625 = vmatpush.bf16.msra.mxu0 %v1571
    %1626 = vmatpush.bf16.msra.mxu0 %v1570
    %1627 = vmatpush.bf16.msra.mxu0 %v1569
    %1628 = vmatpush.bf16.msra.mxu0 %v1568
    %1629 = vmatmul.bf16.gmra.mxu0 %v1410
    %v1630 = vpop.f32.mrf.mxu0
    %v1631 = vadd.f32 %v1618, %v1630
    %v1632 = vpop.f32.mrf.mxu0
    %1633 = vdwg.mxu0
    %1634 = vmatpush.bf16.msra.mxu0 %v1583
    %1635 = vmatpush.bf16.msra.mxu0 %v1582
    %1636 = vmatpush.bf16.msra.mxu0 %v1581
    %1637 = vmatpush.bf16.msra.mxu0 %v1580
    %1638 = vmatpush.bf16.msra.mxu0 %v1579
    %1639 = vmatpush.bf16.msra.mxu0 %v1578
    %1640 = vmatpush.bf16.msra.mxu0 %v1577
    %1641 = vmatpush.bf16.msra.mxu0 %v1576
    %1642 = vmatmul.bf16.gmra.mxu0 %v1411
    %v1643 = vpop.f32.mrf.mxu0
    %v1644 = vadd.f32 %v1631, %v1643
    %v1645 = vpop.f32.mrf.mxu0
    %1646 = vdwg.mxu0
    %s1647 = scalar_lea.vmem %s0, 24
    %v1648 = vld [vmem:[%s1647] sm:$0xff]
    %v1649 = vld [vmem:[%s1647 + $0x8] sm:$0xff]
    %v1650 = vld [vmem:[%s1647 + $0x10] sm:$0xff]
    %v1654 = vunpack.c.l.b16 %v1648
    %v1655 = vunpack.c.h.b16 %v1648
    %v1656 = vunpack.c.l.b16 %v1649
    %v1657 = vunpack.c.h.b16 %v1649
    %v1658 = vunpack.c.l.b16 %v1650
    %v1659 = vunpack.c.h.b16 %v1650
    %v1660 = vpack.c.b16 %v1654, %v1654
    %v1661 = vpack.c.b16 %v1655, %v1655
    %v1662 = vpack.c.b16 %v1656, %v1656
    %v1663 = vpack.c.b16 %v1657, %v1657
    %v1664 = vpack.c.b16 %v1658, %v1658
    %v1665 = vpack.c.b16 %v1659, %v1659
    %1672 = vmatpush.bf16.msra.mxu0 %v776
    %1673 = vmatpush.bf16.msra.mxu0 %v773
    %1674 = vmatpush.bf16.msra.mxu0 %v770
    %1675 = vmatpush.bf16.msra.mxu0 %v767
    %1676 = vmatpush.bf16.msra.mxu0 %v764
    %1677 = vmatpush.bf16.msra.mxu0 %v761
    %1678 = vmatpush.bf16.msra.mxu0 %v758
    %1679 = vmatpush.bf16.msra.mxu0 %v755
    %1680 = vmatmul.bf16.gmra.mxu0 %v1660
    %v1681 = vpop.f32.mrf.mxu0
    %v1682 = vadd.f32 %v248, %v1681
    %v1683 = vpop.f32.mrf.mxu0
    %1684 = vdwg.mxu0
    %1685 = vmatpush.bf16.msra.mxu0 %v800
    %1686 = vmatpush.bf16.msra.mxu0 %v797
    %1687 = vmatpush.bf16.msra.mxu0 %v794
    %1688 = vmatpush.bf16.msra.mxu0 %v791
    %1689 = vmatpush.bf16.msra.mxu0 %v788
    %1690 = vmatpush.bf16.msra.mxu0 %v785
    %1691 = vmatpush.bf16.msra.mxu0 %v782
    %1692 = vmatpush.bf16.msra.mxu0 %v779
    %1693 = vmatmul.bf16.gmra.mxu0 %v1661
    %v1694 = vpop.f32.mrf.mxu0
    %v1695 = vadd.f32 %v1682, %v1694
    %v1696 = vpop.f32.mrf.mxu0
    %1697 = vdwg.mxu0
    %1698 = vmatpush.bf16.msra.mxu0 %v824
    %1699 = vmatpush.bf16.msra.mxu0 %v821
    %1700 = vmatpush.bf16.msra.mxu0 %v818
    %1701 = vmatpush.bf16.msra.mxu0 %v815
    %1702 = vmatpush.bf16.msra.mxu0 %v812
    %1703 = vmatpush.bf16.msra.mxu0 %v809
    %1704 = vmatpush.bf16.msra.mxu0 %v806
    %1705 = vmatpush.bf16.msra.mxu0 %v803
    %1706 = vmatmul.bf16.gmra.mxu0 %v1662
    %v1707 = vpop.f32.mrf.mxu0
    %v1708 = vadd.f32 %v1695, %v1707
    %v1709 = vpop.f32.mrf.mxu0
    %1710 = vdwg.mxu0
    %1711 = vmatpush.bf16.msra.mxu0 %v848
    %1712 = vmatpush.bf16.msra.mxu0 %v845
    %1713 = vmatpush.bf16.msra.mxu0 %v842
    %1714 = vmatpush.bf16.msra.mxu0 %v839
    %1715 = vmatpush.bf16.msra.mxu0 %v836
    %1716 = vmatpush.bf16.msra.mxu0 %v833
    %1717 = vmatpush.bf16.msra.mxu0 %v830
    %1718 = vmatpush.bf16.msra.mxu0 %v827
    %1719 = vmatmul.bf16.gmra.mxu0 %v1663
    %v1720 = vpop.f32.mrf.mxu0
    %v1721 = vadd.f32 %v1708, %v1720
    %v1722 = vpop.f32.mrf.mxu0
    %1723 = vdwg.mxu0
    %1724 = vmatpush.bf16.msra.mxu0 %v872
    %1725 = vmatpush.bf16.msra.mxu0 %v869
    %1726 = vmatpush.bf16.msra.mxu0 %v866
    %1727 = vmatpush.bf16.msra.mxu0 %v863
    %1728 = vmatpush.bf16.msra.mxu0 %v860
    %1729 = vmatpush.bf16.msra.mxu0 %v857
    %1730 = vmatpush.bf16.msra.mxu0 %v854
    %1731 = vmatpush.bf16.msra.mxu0 %v851
    %1732 = vmatmul.bf16.gmra.mxu0 %v1664
    %v1733 = vpop.f32.mrf.mxu0
    %v1734 = vadd.f32 %v1721, %v1733
    %v1735 = vpop.f32.mrf.mxu0
    %1736 = vdwg.mxu0
    %1737 = vmatpush.bf16.msra.mxu0 %v896
    %1738 = vmatpush.bf16.msra.mxu0 %v893
    %1739 = vmatpush.bf16.msra.mxu0 %v890
    %1740 = vmatpush.bf16.msra.mxu0 %v887
    %1741 = vmatpush.bf16.msra.mxu0 %v884
    %1742 = vmatpush.bf16.msra.mxu0 %v881
    %1743 = vmatpush.bf16.msra.mxu0 %v878
    %1744 = vmatpush.bf16.msra.mxu0 %v875
    %1745 = vmatmul.bf16.gmra.mxu0 %v1665
    %v1746 = vpop.f32.mrf.mxu0
    %v1747 = vadd.f32 %v1734, %v1746
    %v1748 = vpop.f32.mrf.mxu0
    %1749 = vdwg.mxu0
    %1750 = vmatpush.bf16.msra.mxu0 %v777
    %1751 = vmatpush.bf16.msra.mxu0 %v774
    %1752 = vmatpush.bf16.msra.mxu0 %v771
    %1753 = vmatpush.bf16.msra.mxu0 %v768
    %1754 = vmatpush.bf16.msra.mxu0 %v765
    %1755 = vmatpush.bf16.msra.mxu0 %v762
    %1756 = vmatpush.bf16.msra.mxu0 %v759
    %1757 = vmatpush.bf16.msra.mxu0 %v756
    %1758 = vmatmul.bf16.gmra.mxu0 %v1660
    %v1759 = vpop.f32.mrf.mxu0
    %v1760 = vadd.f32 %v249, %v1759
    %v1761 = vpop.f32.mrf.mxu0
    %1762 = vdwg.mxu0
    %1763 = vmatpush.bf16.msra.mxu0 %v801
    %1764 = vmatpush.bf16.msra.mxu0 %v798
    %1765 = vmatpush.bf16.msra.mxu0 %v795
    %1766 = vmatpush.bf16.msra.mxu0 %v792
    %1767 = vmatpush.bf16.msra.mxu0 %v789
    %1768 = vmatpush.bf16.msra.mxu0 %v786
    %1769 = vmatpush.bf16.msra.mxu0 %v783
    %1770 = vmatpush.bf16.msra.mxu0 %v780
    %1771 = vmatmul.bf16.gmra.mxu0 %v1661
    %v1772 = vpop.f32.mrf.mxu0
    %v1773 = vadd.f32 %v1760, %v1772
    %v1774 = vpop.f32.mrf.mxu0
    %1775 = vdwg.mxu0
    %1776 = vmatpush.bf16.msra.mxu0 %v825
    %1777 = vmatpush.bf16.msra.mxu0 %v822
    %1778 = vmatpush.bf16.msra.mxu0 %v819
    %1779 = vmatpush.bf16.msra.mxu0 %v816
    %1780 = vmatpush.bf16.msra.mxu0 %v813
    %1781 = vmatpush.bf16.msra.mxu0 %v810
    %1782 = vmatpush.bf16.msra.mxu0 %v807
    %1783 = vmatpush.bf16.msra.mxu0 %v804
    %1784 = vmatmul.bf16.gmra.mxu0 %v1662
    %v1785 = vpop.f32.mrf.mxu0
    %v1786 = vadd.f32 %v1773, %v1785
    %v1787 = vpop.f32.mrf.mxu0
    %1788 = vdwg.mxu0
    %1789 = vmatpush.bf16.msra.mxu0 %v849
    %1790 = vmatpush.bf16.msra.mxu0 %v846
    %1791 = vmatpush.bf16.msra.mxu0 %v843
    %1792 = vmatpush.bf16.msra.mxu0 %v840
    %1793 = vmatpush.bf16.msra.mxu0 %v837
    %1794 = vmatpush.bf16.msra.mxu0 %v834
    %1795 = vmatpush.bf16.msra.mxu0 %v831
    %1796 = vmatpush.bf16.msra.mxu0 %v828
    %1797 = vmatmul.bf16.gmra.mxu0 %v1663
    %v1798 = vpop.f32.mrf.mxu0
    %v1799 = vadd.f32 %v1786, %v1798
    %v1800 = vpop.f32.mrf.mxu0
    %1801 = vdwg.mxu0
    %1802 = vmatpush.bf16.msra.mxu0 %v873
    %1803 = vmatpush.bf16.msra.mxu0 %v870
    %1804 = vmatpush.bf16.msra.mxu0 %v867
    %1805 = vmatpush.bf16.msra.mxu0 %v864
    %1806 = vmatpush.bf16.msra.mxu0 %v861
    %1807 = vmatpush.bf16.msra.mxu0 %v858
    %1808 = vmatpush.bf16.msra.mxu0 %v855
    %1809 = vmatpush.bf16.msra.mxu0 %v852
    %1810 = vmatmul.bf16.gmra.mxu0 %v1664
    %v1811 = vpop.f32.mrf.mxu0
    %v1812 = vadd.f32 %v1799, %v1811
    %v1813 = vpop.f32.mrf.mxu0
    %1814 = vdwg.mxu0
    %1815 = vmatpush.bf16.msra.mxu0 %v897
    %1816 = vmatpush.bf16.msra.mxu0 %v894
    %1817 = vmatpush.bf16.msra.mxu0 %v891
    %1818 = vmatpush.bf16.msra.mxu0 %v888
    %1819 = vmatpush.bf16.msra.mxu0 %v885
    %1820 = vmatpush.bf16.msra.mxu0 %v882
    %1821 = vmatpush.bf16.msra.mxu0 %v879
    %1822 = vmatpush.bf16.msra.mxu0 %v876
    %1823 = vmatmul.bf16.gmra.mxu0 %v1665
    %v1824 = vpop.f32.mrf.mxu0
    %v1825 = vadd.f32 %v1812, %v1824
    %v1826 = vpop.f32.mrf.mxu0
    %1827 = vdwg.mxu0
    %1828 = vmatpush.bf16.msra.mxu0 %v778
    %1829 = vmatpush.bf16.msra.mxu0 %v775
    %1830 = vmatpush.bf16.msra.mxu0 %v772
    %1831 = vmatpush.bf16.msra.mxu0 %v769
    %1832 = vmatpush.bf16.msra.mxu0 %v766
    %1833 = vmatpush.bf16.msra.mxu0 %v763
    %1834 = vmatpush.bf16.msra.mxu0 %v760
    %1835 = vmatpush.bf16.msra.mxu0 %v757
    %1836 = vmatmul.bf16.gmra.mxu0 %v1660
    %v1837 = vpop.f32.mrf.mxu0
    %v1838 = vadd.f32 %v250, %v1837
    %v1839 = vpop.f32.mrf.mxu0
    %1840 = vdwg.mxu0
    %1841 = vmatpush.bf16.msra.mxu0 %v802
    %1842 = vmatpush.bf16.msra.mxu0 %v799
    %1843 = vmatpush.bf16.msra.mxu0 %v796
    %1844 = vmatpush.bf16.msra.mxu0 %v793
    %1845 = vmatpush.bf16.msra.mxu0 %v790
    %1846 = vmatpush.bf16.msra.mxu0 %v787
    %1847 = vmatpush.bf16.msra.mxu0 %v784
    %1848 = vmatpush.bf16.msra.mxu0 %v781
    %1849 = vmatmul.bf16.gmra.mxu0 %v1661
    %v1850 = vpop.f32.mrf.mxu0
    %v1851 = vadd.f32 %v1838, %v1850
    %v1852 = vpop.f32.mrf.mxu0
    %1853 = vdwg.mxu0
    %1854 = vmatpush.bf16.msra.mxu0 %v826
    %1855 = vmatpush.bf16.msra.mxu0 %v823
    %1856 = vmatpush.bf16.msra.mxu0 %v820
    %1857 = vmatpush.bf16.msra.mxu0 %v817
    %1858 = vmatpush.bf16.msra.mxu0 %v814
    %1859 = vmatpush.bf16.msra.mxu0 %v811
    %1860 = vmatpush.bf16.msra.mxu0 %v808
    %1861 = vmatpush.bf16.msra.mxu0 %v805
    %1862 = vmatmul.bf16.gmra.mxu0 %v1662
    %v1863 = vpop.f32.mrf.mxu0
    %v1864 = vadd.f32 %v1851, %v1863
    %v1865 = vpop.f32.mrf.mxu0
    %1866 = vdwg.mxu0
    %1867 = vmatpush.bf16.msra.mxu0 %v850
    %1868 = vmatpush.bf16.msra.mxu0 %v847
    %1869 = vmatpush.bf16.msra.mxu0 %v844
    %1870 = vmatpush.bf16.msra.mxu0 %v841
    %1871 = vmatpush.bf16.msra.mxu0 %v838
    %1872 = vmatpush.bf16.msra.mxu0 %v835
    %1873 = vmatpush.bf16.msra.mxu0 %v832
    %1874 = vmatpush.bf16.msra.mxu0 %v829
    %1875 = vmatmul.bf16.gmra.mxu0 %v1663
    %v1876 = vpop.f32.mrf.mxu0
    %v1877 = vadd.f32 %v1864, %v1876
    %v1878 = vpop.f32.mrf.mxu0
    %1879 = vdwg.mxu0
    %1880 = vmatpush.bf16.msra.mxu0 %v874
    %1881 = vmatpush.bf16.msra.mxu0 %v871
    %1882 = vmatpush.bf16.msra.mxu0 %v868
    %1883 = vmatpush.bf16.msra.mxu0 %v865
    %1884 = vmatpush.bf16.msra.mxu0 %v862
    %1885 = vmatpush.bf16.msra.mxu0 %v859
    %1886 = vmatpush.bf16.msra.mxu0 %v856
    %1887 = vmatpush.bf16.msra.mxu0 %v853
    %1888 = vmatmul.bf16.gmra.mxu0 %v1664
    %v1889 = vpop.f32.mrf.mxu0
    %v1890 = vadd.f32 %v1877, %v1889
    %v1891 = vpop.f32.mrf.mxu0
    %1892 = vdwg.mxu0
    %1893 = vmatpush.bf16.msra.mxu0 %v898
    %1894 = vmatpush.bf16.msra.mxu0 %v895
    %1895 = vmatpush.bf16.msra.mxu0 %v892
    %1896 = vmatpush.bf16.msra.mxu0 %v889
    %1897 = vmatpush.bf16.msra.mxu0 %v886
    %1898 = vmatpush.bf16.msra.mxu0 %v883
    %1899 = vmatpush.bf16.msra.mxu0 %v880
    %1900 = vmatpush.bf16.msra.mxu0 %v877
    %1901 = vmatmul.bf16.gmra.mxu0 %v1665
    %v1902 = vpop.f32.mrf.mxu0
    %v1903 = vadd.f32 %v1890, %v1902
    %v1904 = vpop.f32.mrf.mxu0
    %1905 = vdwg.mxu0
    %v1906 = vrot.slane %v1747, 4
    %v1907 = vadd.f32 %v1747, %v1906
    %v1908 = vrot.slane %v1907, 2
    %v1909 = vadd.f32 %v1907, %v1908
    %v1910 = vrot.slane %v1909, 1
    %v1911 = vadd.f32 %v1909, %v1910
    %v1912 = vrot.slane %v1825, 4
    %v1913 = vadd.f32 %v1825, %v1912
    %v1914 = vrot.slane %v1913, 2
    %v1915 = vadd.f32 %v1913, %v1914
    %v1916 = vrot.slane %v1915, 1
    %v1917 = vadd.f32 %v1915, %v1916
    %v1918 = vrot.slane %v1903, 4
    %v1919 = vadd.f32 %v1903, %v1918
    %v1920 = vrot.slane %v1919, 2
    %v1921 = vadd.f32 %v1919, %v1920
    %v1922 = vrot.slane %v1921, 1
    %v1923 = vadd.f32 %v1921, %v1922
    %v1924 = vmul.f32 %v1911, %v1297
    %v1925 = vmul.f32 %v1917, %v1298
    %v1926 = vmul.f32 %v1923, %v1299
    %v1927 = vsel %vm1306, %v1924, 0.0
    %v1928 = vsel %vm1306, %v1925, 0.0
    %v1929 = vadd.f32 %v1927, %v1928
    %v1930 = vsel %vm1306, %v1926, 0.0
    %v1931 = vadd.f32 %v1929, %v1930
    %1932 = vadd.xlane.f32.xlu0 %v1931
    %v1933 = vpop.xlane.xlu0 %1932
    %v1934 = vmul.f32 %v1933, 0.00390625
    %v1935 = vxor.u32 %v1934, 2147483648
    %v1936 = vmul.f32 %v1935, 1.442695
    %v1937 = vpow.pop %v1936
    %v1938 = vadd.f32 %v1937, 1.0
    %v1939 = vrcp.pop %v1938
    %v1940 = vmul.f32 %v1938, %v1939
    %v1941 = vsub.f32 1.0, %v1940
    %v1942 = vmul.f32 %v1939, %v1941
    %v1943 = vadd.f32 %v1939, %v1942
    %vm1944 = vweird.f32 %v1938
    %vm1945 = vweird.f32 %v1939
    %vm1946 = vmor %vm1944, %vm1945
    %v1947 = vsel %vm1946, %v1939, %v1943
    %v1948 = vand.u32 2147483647, %v1938
    %vm1949 = vcmp.eq.f32.partialorder %v1948, 8.507059e+37
    %v1950 = vand.u32 %v1938, 2147483648
    %v1951 = vor.u32 1.1754944e-38, %v1950
    %v1952 = vsel %vm1949, %v1951, %v1947
    %v1953 = vmul.f32 1.0, %v1952
    %v1954 = vmul.f32 %v1934, %v1953
    %v1955 = vmul.f32 %v1954, %v1337
    %v1956 = vmul.f32 %v1954, %v1338
    %v1957 = vmul.f32 %v1954, %v1339
    %v1958 = vxor.u32 %v1955, 2147483648
    %v1959 = vxor.u32 %v1956, 2147483648
    %v1960 = vxor.u32 %v1957, 2147483648
    %v1961 = vmul.f32 %v1958, 1.442695
    %v1962 = vpow.pop %v1961
    %v1963 = vmul.f32 %v1959, 1.442695
    %v1964 = vpow.pop %v1963
    %v1965 = vmul.f32 %v1960, 1.442695
    %v1966 = vpow.pop %v1965
    %v1967 = vadd.f32 %v1962, 1.0
    %v1968 = vadd.f32 %v1964, 1.0
    %v1969 = vadd.f32 %v1966, 1.0
    %v1970 = vrcp.pop %v1967
    %v1971 = vmul.f32 %v1967, %v1970
    %v1972 = vsub.f32 1.0, %v1971
    %v1973 = vmul.f32 %v1970, %v1972
    %v1974 = vadd.f32 %v1970, %v1973
    %vm1975 = vweird.f32 %v1967
    %vm1976 = vweird.f32 %v1970
    %vm1977 = vmor %vm1975, %vm1976
    %v1978 = vsel %vm1977, %v1970, %v1974
    %v1979 = vand.u32 2147483647, %v1967
    %vm1980 = vcmp.eq.f32.partialorder %v1979, 8.507059e+37
    %v1981 = vand.u32 %v1967, 2147483648
    %v1982 = vor.u32 1.1754944e-38, %v1981
    %v1983 = vsel %vm1980, %v1982, %v1978
    %v1984 = vmul.f32 1.0, %v1983
    %v1985 = vrcp.pop %v1968
    %v1986 = vmul.f32 %v1968, %v1985
    %v1987 = vsub.f32 1.0, %v1986
    %v1988 = vmul.f32 %v1985, %v1987
    %v1989 = vadd.f32 %v1985, %v1988
    %vm1990 = vweird.f32 %v1968
    %vm1991 = vweird.f32 %v1985
    %vm1992 = vmor %vm1990, %vm1991
    %v1993 = vsel %vm1992, %v1985, %v1989
    %v1994 = vand.u32 2147483647, %v1968
    %vm1995 = vcmp.eq.f32.partialorder %v1994, 8.507059e+37
    %v1996 = vand.u32 %v1968, 2147483648
    %v1997 = vor.u32 1.1754944e-38, %v1996
    %v1998 = vsel %vm1995, %v1997, %v1993
    %v1999 = vmul.f32 1.0, %v1998
    %v2000 = vrcp.pop %v1969
    %v2001 = vmul.f32 %v1969, %v2000
    %v2002 = vsub.f32 1.0, %v2001
    %v2003 = vmul.f32 %v2000, %v2002
    %v2004 = vadd.f32 %v2000, %v2003
    %vm2005 = vweird.f32 %v1969
    %vm2006 = vweird.f32 %v2000
    %vm2007 = vmor %vm2005, %vm2006
    %v2008 = vsel %vm2007, %v2000, %v2004
    %v2009 = vand.u32 2147483647, %v1969
    %vm2010 = vcmp.eq.f32.partialorder %v2009, 8.507059e+37
    %v2011 = vand.u32 %v1969, 2147483648
    %v2012 = vor.u32 1.1754944e-38, %v2011
    %v2013 = vsel %vm2010, %v2012, %v2008
    %v2014 = vmul.f32 1.0, %v2013
    %v2015 = vperm.slane %v1984, 0
    %v2016 = vperm.slane %v1999, 0
    %v2017 = vperm.slane %v2014, 0
    %v2018 = vmul.f32 %v1747, %v2015
    %v2019 = vmul.f32 %v1825, %v2016
    %v2020 = vmul.f32 %v1903, %v2017
    %v2021 = vpack.c.bf16 %v2018, %v2018
    %v2022 = vpack.c.bf16 %v2019, %v2019
    %v2023 = vpack.c.bf16 %v2020, %v2020
    %2024 = vmatpush.bf16.msra.mxu0 %v1567
    %2025 = vmatpush.bf16.msra.mxu0 %v1566
    %2026 = vmatpush.bf16.msra.mxu0 %v1565
    %2027 = vmatpush.bf16.msra.mxu0 %v1564
    %2028 = vmatpush.bf16.msra.mxu0 %v1563
    %2029 = vmatpush.bf16.msra.mxu0 %v1562
    %2030 = vmatpush.bf16.msra.mxu0 %v1561
    %2031 = vmatpush.bf16.msra.mxu0 %v1560
    %2032 = vmatmul.bf16.gmra.mxu0 %v2021
    %v2033 = vpop.f32.mrf.mxu0
    %v2034 = vadd.f32 %v1462, %v2033
    %v2035 = vpop.f32.mrf.mxu0
    %2036 = vdwg.mxu0
    %2037 = vmatpush.bf16.msra.mxu0 %v1575
    %2038 = vmatpush.bf16.msra.mxu0 %v1574
    %2039 = vmatpush.bf16.msra.mxu0 %v1573
    %2040 = vmatpush.bf16.msra.mxu0 %v1572
    %2041 = vmatpush.bf16.msra.mxu0 %v1571
    %2042 = vmatpush.bf16.msra.mxu0 %v1570
    %2043 = vmatpush.bf16.msra.mxu0 %v1569
    %2044 = vmatpush.bf16.msra.mxu0 %v1568
    %2045 = vmatmul.bf16.gmra.mxu0 %v2022
    %v2046 = vpop.f32.mrf.mxu0
    %v2047 = vadd.f32 %v2034, %v2046
    %v2048 = vpop.f32.mrf.mxu0
    %2049 = vdwg.mxu0
    %2050 = vmatpush.bf16.msra.mxu0 %v1583
    %2051 = vmatpush.bf16.msra.mxu0 %v1582
    %2052 = vmatpush.bf16.msra.mxu0 %v1581
    %2053 = vmatpush.bf16.msra.mxu0 %v1580
    %2054 = vmatpush.bf16.msra.mxu0 %v1579
    %2055 = vmatpush.bf16.msra.mxu0 %v1578
    %2056 = vmatpush.bf16.msra.mxu0 %v1577
    %2057 = vmatpush.bf16.msra.mxu0 %v1576
    %2058 = vmatmul.bf16.gmra.mxu0 %v2023
    %v2059 = vpop.f32.mrf.mxu0
    %v2060 = vadd.f32 %v2047, %v2059
    %v2061 = vpop.f32.mrf.mxu0
    %2062 = vdwg.mxu0
    %v2063 = vrot.slane %v1644, 4
    %v2064 = vadd.f32 %v1644, %v2063
    %v2065 = vrot.slane %v2064, 2
    %v2066 = vadd.f32 %v2064, %v2065
    %v2067 = vrot.slane %v2066, 1
    %v2068 = vadd.f32 %v2066, %v2067
    %v2069 = vld [vmem:[%s7] sm:$0xff]
    %v2070 = vld [vmem:[%s7 + $0x8] sm:$0xff]
    %v2071 = vld [vmem:[%s7 + $0x10] sm:$0xff]
    %v2072 = vld [vmem:[%s7 + $0x18] sm:$0xff]
    %v2073 = vld [vmem:[%s7 + $0x20] sm:$0xff]
    %v2074 = vld [vmem:[%s7 + $0x28] sm:$0xff]
    %v2075 = vld [vmem:[%s7 + $0x30] sm:$0xff]
    %v2076 = vld [vmem:[%s7 + $0x38] sm:$0xff]
    %v2077 = vld [vmem:[%s7 + $0x40] sm:$0xff]
    %v2078 = vld [vmem:[%s7 + $0x48] sm:$0xff]
    %v2079 = vld [vmem:[%s7 + $0x50] sm:$0xff]
    %v2080 = vld [vmem:[%s7 + $0x58] sm:$0xff]
    %v2081 = vld [vmem:[%s7 + $0x60] sm:$0xff]
    %v2082 = vld [vmem:[%s7 + $0x68] sm:$0xff]
    %v2083 = vld [vmem:[%s7 + $0x70] sm:$0xff]
    %v2084 = vld [vmem:[%s7 + $0x78] sm:$0xff]
    %v2085 = vrot.slane %v2060, 4
    %v2086 = vadd.f32 %v2060, %v2085
    %v2087 = vrot.slane %v2086, 2
    %v2088 = vadd.f32 %v2086, %v2087
    %v2089 = vrot.slane %v2088, 1
    %v2090 = vadd.f32 %v2088, %v2089
    %2091 = vmatpush.msra.mxu0 %v2084
    %2092 = vmatpush.msra.mxu0 %v2083
    %2093 = vmatpush.msra.mxu0 %v2082
    %2094 = vmatpush.msra.mxu0 %v2081
    %2095 = vmatpush.msra.mxu0 %v2080
    %2096 = vmatpush.msra.mxu0 %v2079
    %2097 = vmatpush.msra.mxu0 %v2078
    %2098 = vmatpush.msra.mxu0 %v2077
    %2099 = vmatpush.msra.mxu0 %v2076
    %2100 = vmatpush.msra.mxu0 %v2075
    %2101 = vmatpush.msra.mxu0 %v2074
    %2102 = vmatpush.msra.mxu0 %v2073
    %2103 = vmatpush.msra.mxu0 %v2072
    %2104 = vmatpush.msra.mxu0 %v2071
    %2105 = vmatpush.msra.mxu0 %v2070
    %2106 = vmatpush.msra.mxu0 %v2069
    %2107 = vmatmul.f32.gmra.mxu0 %v2090
    %v2108 = vpop.f32.mrf.mxu0
    %v2109 = vadd.f32 0.0, %v2108
    %2110 = vdwg.mxu0
    %2111 = vmatpush.msra.mxu0 %v2084
    %2112 = vmatpush.msra.mxu0 %v2083
    %2113 = vmatpush.msra.mxu0 %v2082
    %2114 = vmatpush.msra.mxu0 %v2081
    %2115 = vmatpush.msra.mxu0 %v2080
    %2116 = vmatpush.msra.mxu0 %v2079
    %2117 = vmatpush.msra.mxu0 %v2078
    %2118 = vmatpush.msra.mxu0 %v2077
    %2119 = vmatpush.msra.mxu0 %v2076
    %2120 = vmatpush.msra.mxu0 %v2075
    %2121 = vmatpush.msra.mxu0 %v2074
    %2122 = vmatpush.msra.mxu0 %v2073
    %2123 = vmatpush.msra.mxu0 %v2072
    %2124 = vmatpush.msra.mxu0 %v2071
    %2125 = vmatpush.msra.mxu0 %v2070
    %2126 = vmatpush.msra.mxu0 %v2069
    %2127 = vmatmul.f32.gmra.mxu0 %v2068
    %v2128 = vpop.f32.mrf.mxu0
    %v2129 = vadd.f32 %v2109, %v2128
    %2130 = vdwg.mxu0
    %v2131 = vmul.f32 %v2129, 0.001953125
    %v2132 = vld [vmem:[%s8] sm:$0xf]
    %vm2133 = vcmask 31744
    %v2135 = vsel %vm2133, %v2131, 0
    %vm2137 = vcmask 1043456
    %v2139 = vsel %vm2137, %v2132, 0
    %2141 = vmatpush.msra.mxu0 0.0
    %2142 = vmatpush.msra.mxu0 0.0
    %2143 = vmatpush.msra.mxu0 0.0
    %2144 = vmatpush.msra.mxu0 0.0
    %2145 = vmatpush.msra.mxu0 0.0
    %2146 = vmatpush.msra.mxu0 0.0
    %2147 = vmatpush.msra.mxu0 0.0
    %2148 = vmatpush.msra.mxu0 0.0
    %2149 = vmatpush.msra.mxu0 0.0
    %2150 = vmatpush.msra.mxu0 0.0
    %2151 = vmatpush.msra.mxu0 0.0
    %2152 = vmatpush.msra.mxu0 0.0
    %2153 = vmatpush.msra.mxu0 0.0
    %2154 = vmatpush.msra.mxu0 0.0
    %2155 = vmatpush.msra.mxu0 0.0
    %2156 = vmatpush.msra.mxu0 %v2139
    %2157 = vmatmul.f32.gmra.mxu0 %v2135
    %v2158 = vpop.f32.mrf.mxu0
    %v2159 = vadd.f32 0.0, %v2158
    %2160 = vdwg.mxu0
    %v2161 = vperm.slane %v2159, 0
    %v2162 = vsub.f32 %v1644, %v2161
    %v2163 = vmul.f32 %v2162, %v2162
    %v2164 = vrot.slane %v2163, 4
    %v2165 = vadd.f32 %v2163, %v2164
    %v2166 = vrot.slane %v2165, 2
    %v2167 = vadd.f32 %v2165, %v2166
    %v2168 = vrot.slane %v2167, 1
    %v2169 = vadd.f32 %v2167, %v2168
    %v2170 = vsub.f32 %v2060, %v2161
    %v2171 = vmul.f32 %v2170, %v2170
    %v2172 = vrot.slane %v2171, 4
    %v2173 = vadd.f32 %v2171, %v2172
    %v2174 = vrot.slane %v2173, 2
    %v2175 = vadd.f32 %v2173, %v2174
    %v2176 = vrot.slane %v2175, 1
    %v2177 = vadd.f32 %v2175, %v2176
    %2178 = vmatpush.msra.mxu0 %v2084
    %2179 = vmatpush.msra.mxu0 %v2083
    %2180 = vmatpush.msra.mxu0 %v2082
    %2181 = vmatpush.msra.mxu0 %v2081
    %2182 = vmatpush.msra.mxu0 %v2080
    %2183 = vmatpush.msra.mxu0 %v2079
    %2184 = vmatpush.msra.mxu0 %v2078
    %2185 = vmatpush.msra.mxu0 %v2077
    %2186 = vmatpush.msra.mxu0 %v2076
    %2187 = vmatpush.msra.mxu0 %v2075
    %2188 = vmatpush.msra.mxu0 %v2074
    %2189 = vmatpush.msra.mxu0 %v2073
    %2190 = vmatpush.msra.mxu0 %v2072
    %2191 = vmatpush.msra.mxu0 %v2071
    %2192 = vmatpush.msra.mxu0 %v2070
    %2193 = vmatpush.msra.mxu0 %v2069
    %2194 = vmatmul.f32.gmra.mxu0 %v2177
    %v2195 = vpop.f32.mrf.mxu0
    %v2196 = vadd.f32 0.0, %v2195
    %2197 = vdwg.mxu0
    %2198 = vmatpush.msra.mxu0 %v2084
    %2199 = vmatpush.msra.mxu0 %v2083
    %2200 = vmatpush.msra.mxu0 %v2082
    %2201 = vmatpush.msra.mxu0 %v2081
    %2202 = vmatpush.msra.mxu0 %v2080
    %2203 = vmatpush.msra.mxu0 %v2079
    %2204 = vmatpush.msra.mxu0 %v2078
    %2205 = vmatpush.msra.mxu0 %v2077
    %2206 = vmatpush.msra.mxu0 %v2076
    %2207 = vmatpush.msra.mxu0 %v2075
    %2208 = vmatpush.msra.mxu0 %v2074
    %2209 = vmatpush.msra.mxu0 %v2073
    %2210 = vmatpush.msra.mxu0 %v2072
    %2211 = vmatpush.msra.mxu0 %v2071
    %2212 = vmatpush.msra.mxu0 %v2070
    %2213 = vmatpush.msra.mxu0 %v2069
    %2214 = vmatmul.f32.gmra.mxu0 %v2169
    %v2215 = vpop.f32.mrf.mxu0
    %v2216 = vadd.f32 %v2196, %v2215
    %2217 = vdwg.mxu0
    %v2218 = vmul.f32 %v2216, 0.001953125
    %v2219 = vld [vmem:[%s9] sm:$0x3]
    %v2220 = vadd.f32 %v2218, 1e-05
    %v2221 = vrsqrt.pop %v2220
    %v2222 = vmul.f32 %v2221, %v2220
    %v2223 = vmul.f32 %v2222, %v2221
    %v2224 = vmul.f32 0.5, %v2223
    %v2225 = vsub.f32 1.5, %v2224
    %v2226 = vmul.f32 %v2221, %v2225
    %vm2227 = vweird.f32 %v2220
    %vm2228 = vweird.f32 %v2221
    %vm2229 = vmor %vm2227, %vm2228
    %v2230 = vsel %vm2229, %v2221, %v2226
    %v2231 = vmul.f32 %v2219, %v2230
    %v2232 = vmul.f32 %v2131, %v2231
    %v2234 = vrot.slane %v2232, 7
    %v2236 = vsub.f32 %v2219, %v2234
    %v2238 = vsel %vm2133, %v2231, 0
    %2240 = vmatpush.msra.mxu0 0.0
    %2241 = vmatpush.msra.mxu0 0.0
    %2242 = vmatpush.msra.mxu0 0.0
    %2243 = vmatpush.msra.mxu0 0.0
    %2244 = vmatpush.msra.mxu0 0.0
    %2245 = vmatpush.msra.mxu0 0.0
    %2246 = vmatpush.msra.mxu0 0.0
    %2247 = vmatpush.msra.mxu0 0.0
    %2248 = vmatpush.msra.mxu0 0.0
    %2249 = vmatpush.msra.mxu0 0.0
    %2250 = vmatpush.msra.mxu0 0.0
    %2251 = vmatpush.msra.mxu0 0.0
    %2252 = vmatpush.msra.mxu0 0.0
    %2253 = vmatpush.msra.mxu0 0.0
    %2254 = vmatpush.msra.mxu0 0.0
    %2255 = vmatpush.msra.mxu0 %v2139
    %2256 = vmatmul.f32.gmra.mxu0 %v2238
    %v2257 = vpop.f32.mrf.mxu0
    %v2258 = vadd.f32 0.0, %v2257
    %2259 = vdwg.mxu0
    %v2261 = vrot.slane %v2236, 1
    %v2262 = vsel %vm2133, %v2261, 0
    %2264 = vmatpush.msra.mxu0 0.0
    %2265 = vmatpush.msra.mxu0 0.0
    %2266 = vmatpush.msra.mxu0 0.0
    %2267 = vmatpush.msra.mxu0 0.0
    %2268 = vmatpush.msra.mxu0 0.0
    %2269 = vmatpush.msra.mxu0 0.0
    %2270 = vmatpush.msra.mxu0 0.0
    %2271 = vmatpush.msra.mxu0 0.0
    %2272 = vmatpush.msra.mxu0 0.0
    %2273 = vmatpush.msra.mxu0 0.0
    %2274 = vmatpush.msra.mxu0 0.0
    %2275 = vmatpush.msra.mxu0 0.0
    %2276 = vmatpush.msra.mxu0 0.0
    %2277 = vmatpush.msra.mxu0 0.0
    %2278 = vmatpush.msra.mxu0 0.0
    %2279 = vmatpush.msra.mxu0 %v2139
    %2280 = vmatmul.f32.gmra.mxu0 %v2262
    %v2281 = vpop.f32.mrf.mxu0
    %v2282 = vadd.f32 0.0, %v2281
    %2283 = vdwg.mxu0
    %v2284 = vperm.slane %v2258, 0
    %v2285 = vmul.f32 %v1644, %v2284
    %v2286 = vperm.slane %v2282, 0
    %v2287 = vadd.f32 %v2285, %v2286
    %v2288 = vmax.f32 %v2287, 0.0
    %2289 = vst [vmem:[%s10] sm:$0xff] %v2288
    %v2290 = vmul.f32 %v2060, %v2284
    %v2291 = vadd.f32 %v2290, %v2286
    %v2292 = vmax.f32 %v2291, 0.0
    %s2293 = scalar_lea.vmem %s10, 8
    %2294 = vst [vmem:[%s2293] sm:$0xff] %v2292
    // Predicated region
    $region46: #{msffe_apply.1} parent=1 // pred_check
      _
    $region47: #{msffe_apply.1} parent=1 // pred_check_branch
      %2296 = sbr.rel (0) target = $region49
    $region48: #{msffe_apply.1} parent=1 // pred_region
      _
    $region49: #{msffe_apply.1} parent=1 // pred_fallthru
      _
    // Predicated region
    $region50: #{msffe_apply.1} parent=1 // pred_check
      _
    $region51: #{msffe_apply.1} parent=1 // pred_check_branch
      %2298 = sbr.rel (0) target = $region53
    $region52: #{msffe_apply.1} parent=1 // pred_region
      _
    $region53: #{msffe_apply.1} parent=1 // pred_fallthru
      _
    %2299 = vsyncpa [#allocation3], 1

</llo_original>
